<compile_context>
chip_gen: v5e
topology: v5e:2x2
jax: 0.10.0
libtpu: 0.0.40
codegen_flags: <defaults>
</compile_context>

<pallas_src>
import numpy as np
import jax
import jax.numpy as jnp
from jax.experimental import pallas as pl
from jax.experimental.pallas import tpu as pltpu


def _gather_rows_kernel(idx_ref, pos_hbm, x_hbm, pos_out, x_out, sems):
    """Gather one chunk of sampled rows via per-row HBM->VMEM DMAs.

    idx_ref : SMEM int32 [M_pad]   (scalar prefetch)
    pos_hbm : HBM  [N, P]          (memory_space=pl.ANY; unsampled rows never read)
    x_hbm   : HBM  [N, F]
    pos_out : VMEM [TM, P]         (this grid step's output block)
    x_out   : VMEM [TM, F]
    sems    : DMA semaphores [2, TM]
    """
    tm = pos_out.shape[0]
    base = pl.program_id(0) * tm

    # Issue all 2*TM row DMAs up front so they are concurrently in flight,
    # then wait on them.  All SMEM index reads happen before any .wait().
    copies = []
    for r in range(tm):                       # tm is a static Python int
        src = idx_ref[base + r]
        cp_p = pltpu.make_async_copy(pos_hbm.at[pl.ds(src, 1), :],
                                     pos_out.at[pl.ds(r, 1), :],
                                     sems.at[0, r])
        cp_x = pltpu.make_async_copy(x_hbm.at[pl.ds(src, 1), :],
                                     x_out.at[pl.ds(r, 1), :],
                                     sems.at[1, r])
        cp_p.start()
        cp_x.start()
        copies.append((cp_p, cp_x))
    for cp_p, cp_x in copies:
        cp_p.wait()
        cp_x.wait()


def pallas_row_gather(pos, x, idx, *, rows_per_step=None):
    """Gather rows `idx` of pos [N, P] and x [N, F] -> ([M, P], [M, F])."""
    N, P = pos.shape
    Nx, F = x.shape
    assert N == Nx, "pos and x must have the same number of rows"
    M = int(idx.shape[0])

    if rows_per_step is None:
        rows_per_step = 8 if M <= 128 else 32   # multiple of 8 (sublane tile)
    TM = int(rows_per_step)
    M_pad = ((M + TM - 1) // TM) * TM

    idx32 = idx.astype(jnp.int32)
    if M_pad != M:
        idx32 = jnp.pad(idx32, (0, M_pad - M))  # pad with a valid row index (0)

    grid_spec = pltpu.PrefetchScalarGridSpec(
        num_scalar_prefetch=1,                   # idx -> SMEM
        grid=(M_pad // TM,),
        in_specs=[pl.BlockSpec(memory_space=pl.ANY),    # pos stays in HBM
                  pl.BlockSpec(memory_space=pl.ANY)],   # x   stays in HBM
        out_specs=[pl.BlockSpec((TM, P), lambda i, idx_ref: (i, 0)),
                   pl.BlockSpec((TM, F), lambda i, idx_ref: (i, 0))],
        scratch_shapes=[pltpu.SemaphoreType.DMA((2, TM))],
    )
    pos_out, x_out = pl.pallas_call(
        _gather_rows_kernel,
        grid_spec=grid_spec,
        out_shape=(jax.ShapeDtypeStruct((M_pad, P), pos.dtype),
                   jax.ShapeDtypeStruct((M_pad, F), x.dtype)),
        compiler_params=pltpu.CompilerParams(
            # Disjoint output chunks, disjoint HBM row reads -> safe to shard
            # across v7x's 2 TensorCores; no grid-invariant resident input to
            # duplicate any more.
            dimension_semantics=("parallel",)),
    )(idx32, pos, x)
    return pos_out[:M], x_out[:M]


def node_sampling(pos, x, batch, *, nodes_per_graph, key, counts=None,
                  training=True):
    """JAX/Pallas equivalent of NodeSampling.forward.

    pos:   [N, 3]  float node positions
    x:     [N, F]  float node features
    batch: [N]     int32 graph-id per node (sorted, PyG convention)
    counts: optional per-graph node counts (host-static).  Pass it explicitly
            to keep the function jit-friendly (avoids a host sync on `batch`).
    Returns (pos, x, batch) with `nodes_per_graph` nodes kept per graph when
    training, otherwise unchanged (eval mode is identity, like the module).
    """
    if not training:
        return pos, x, batch

    if counts is None:
        # Host-side fallback (requires concrete `batch`); prefer passing counts.
        # TODO(synk): raise under jit instead of host-syncing here.
        counts = np.bincount(np.asarray(jax.device_get(batch)))
    counts = np.asarray(counts, dtype=np.int64)
    num_graphs = int(counts.shape[0])
    if np.any(counts < nodes_per_graph):
        raise ValueError(
            "every graph needs at least `nodes_per_graph` nodes "
            f"(counts={counts.tolist()}, nodes_per_graph={nodes_per_graph})")
    offsets = np.concatenate([[0], np.cumsum(counts)[:-1]])

    # torch.randperm(counts[g])[:num] + offset  (trace-time loop, pure JAX ops).
    keys = jax.random.split(key, num_graphs)
    idx = jnp.concatenate([
        jax.random.permutation(keys[g], int(counts[g]))[:nodes_per_graph]
        .astype(jnp.int32) + np.int32(offsets[g])
        for g in range(num_graphs)])

    # Pallas index-driven row gather at native dtype (reads only M rows of HBM).
    pos_s, x_s = pallas_row_gather(pos, x, idx)
    # batch is integer: gather it exactly (tiny, M int32), never via float.
    batch_s = jnp.take(batch, idx, axis=0)
    return pos_s, x_s, batch_s


if __name__ == "__main__":
    key = jax.random.PRNGKey(0)

    # Small example consistent with the module: 2 graphs (16 and 12 nodes),
    # 3-D positions, 4-dim node features, sample 8 nodes per graph.
    counts = [16, 12]
    N = sum(counts)
    F = 4
    nodes_per_graph = 8

    k1, k2, k3 = jax.random.split(key, 3)
    pos = jax.random.normal(k1, (N, 3), dtype=jnp.float32)
    x = jax.random.normal(k2, (N, F), dtype=jnp.float32)
    batch = jnp.concatenate(
        [jnp.full((c,), g, dtype=jnp.int32) for g, c in enumerate(counts)])

    # 1) Direct correctness check of the Pallas row gather vs fancy indexing
    #    (one chunk-aligned index set, one that exercises the padding path).
    for test_idx in (jnp.array([5, 0, 17, 27, 3, 16, 9, 20], dtype=jnp.int32),
                     jnp.array([26, 1, 13, 7, 22], dtype=jnp.int32)):
        pos_g, x_g = pallas_row_gather(pos, x, test_idx)
        jax.block_until_ready((pos_g, x_g))
        np.testing.assert_array_equal(
            np.asarray(pos_g), np.asarray(pos)[np.asarray(test_idx)])
        np.testing.assert_array_equal(
            np.asarray(x_g), np.asarray(x)[np.asarray(test_idx)])

    # 2) Full NodeSampling forward (training=True).
    pos_s, x_s, batch_s = node_sampling(
        pos, x, batch, nodes_per_graph=nodes_per_graph, key=k3,
        counts=counts, training=True)
    jax.block_until_ready((pos_s, x_s, batch_s))

    M = len(counts) * nodes_per_graph
    assert pos_s.shape == (M, 3)
    assert x_s.shape == (M, F)
    assert batch_s.shape == (M,)
    # Each graph contributes exactly `nodes_per_graph` nodes, in graph order.
    assert np.array_equal(
        np.asarray(batch_s), np.repeat(np.arange(len(counts)), nodes_per_graph))

    # Every sampled row must be a bit-exact copy of some original row of its graph.
    pos_np, x_np, b_np = np.asarray(pos), np.asarray(x), np.asarray(batch)
    pos_sn, x_sn, b_sn = np.asarray(pos_s), np.asarray(x_s), np.asarray(batch_s)
    for i in range(M):
        match = (np.all(pos_np == pos_sn[i], axis=1)
                 & np.all(x_np == x_sn[i], axis=1)
                 & (b_np == b_sn[i]))
        assert match.any()

    # 3) Eval mode is the identity.
    pos_e, x_e, batch_e = node_sampling(
        pos, x, batch, nodes_per_graph=nodes_per_graph, key=k3, training=False)
    assert pos_e.shape == pos.shape and x_e.shape == x.shape and batch_e.shape == batch.shape

    print("KERNEL_OK")
</pallas_src>

<mosaic_0001>
module attributes {stable_mosaic.version = 11 : i64} {
  func.func @_gather_rows_kernel(%arg0: i32, %arg1: memref<8xi32, #tpu.memory_space<smem>>, %arg2: memref<28x3xf32, #tpu.memory_space<any>>, %arg3: memref<28x4xf32, #tpu.memory_space<any>>, %arg4: memref<8x3xf32, #tpu.memory_space<vmem>>, %arg5: memref<8x4xf32, #tpu.memory_space<vmem>>, %arg6: memref<2x8x!tpu.dma_semaphore, #tpu.memory_space<semaphore_mem>>) attributes {dimension_semantics = [#tpu.dimension_semantics<parallel>], iteration_bounds = array<i64: 1>, scalar_prefetch = 1 : i64, scratch_operands = 1 : i64, tpu.core_type = #tpu.core_type<tc>, window_params = [{}, {}, {transform_indices = @transform_2, window_bounds = array<i64: 8, 3>}, {transform_indices = @transform_3, window_bounds = array<i64: 8, 4>}]} {
    %c8_i32 = arith.constant 8 : i32
    %0 = arith.muli %arg0, %c8_i32 : i32
    %c0_i32 = arith.constant 0 : i32
    %1 = arith.addi %0, %c0_i32 : i32
    %2 = arith.index_cast %1 : i32 to index
    %3 = memref.load %arg1[%2] : memref<8xi32, #tpu.memory_space<smem>>
    %c0_i32_0 = arith.constant 0 : i32
    %c0_i32_1 = arith.constant 0 : i32
    %c0_i32_2 = arith.constant 0 : i32
    %4 = tpu.memref_slice %arg2[%3, %c0_i32_2] : memref<28x3xf32, #tpu.memory_space<any>> -> memref<1x3xf32, #tpu.memory_space<any>>
    %c0_i32_3 = arith.constant 0 : i32
    %c0_i32_4 = arith.constant 0 : i32
    %5 = tpu.memref_slice %arg4[%c0_i32_3, %c0_i32_4] : memref<8x3xf32, #tpu.memory_space<vmem>> -> memref<1x3xf32, #tpu.memory_space<vmem>>
    %6 = tpu.memref_slice %arg6[%c0_i32_0, %c0_i32_1] : memref<2x8x!tpu.dma_semaphore, #tpu.memory_space<semaphore_mem>> -> memref<1x1x!tpu.dma_semaphore, #tpu.memory_space<semaphore_mem>>
    %7 = tpu.memref_squeeze %6 : memref<1x1x!tpu.dma_semaphore, #tpu.memory_space<semaphore_mem>> -> memref<!tpu.dma_semaphore, #tpu.memory_space<semaphore_mem>>
    tpu.enqueue_dma source(%4 : memref<1x3xf32, #tpu.memory_space<any>>) target(%5 : memref<1x3xf32, #tpu.memory_space<vmem>>) target_semaphore(%7 : memref<!tpu.dma_semaphore, #tpu.memory_space<semaphore_mem>>)
    %c1_i32 = arith.constant 1 : i32
    %c0_i32_5 = arith.constant 0 : i32
    %c0_i32_6 = arith.constant 0 : i32
    %8 = tpu.memref_slice %arg3[%3, %c0_i32_6] : memref<28x4xf32, #tpu.memory_space<any>> -> memref<1x4xf32, #tpu.memory_space<any>>
    %c0_i32_7 = arith.constant 0 : i32
    %c0_i32_8 = arith.constant 0 : i32
    %9 = tpu.memref_slice %arg5[%c0_i32_7, %c0_i32_8] : memref<8x4xf32, #tpu.memory_space<vmem>> -> memref<1x4xf32, #tpu.memory_space<vmem>>
    %10 = tpu.memref_slice %arg6[%c1_i32, %c0_i32_5] : memref<2x8x!tpu.dma_semaphore, #tpu.memory_space<semaphore_mem>> -> memref<1x1x!tpu.dma_semaphore, #tpu.memory_space<semaphore_mem>>
    %11 = tpu.memref_squeeze %10 : memref<1x1x!tpu.dma_semaphore, #tpu.memory_space<semaphore_mem>> -> memref<!tpu.dma_semaphore, #tpu.memory_space<semaphore_mem>>
    tpu.enqueue_dma source(%8 : memref<1x4xf32, #tpu.memory_space<any>>) target(%9 : memref<1x4xf32, #tpu.memory_space<vmem>>) target_semaphore(%11 : memref<!tpu.dma_semaphore, #tpu.memory_space<semaphore_mem>>)
    %c1_i32_9 = arith.constant 1 : i32
    %12 = arith.addi %0, %c1_i32_9 : i32
    %13 = arith.index_cast %12 : i32 to index
    %14 = memref.load %arg1[%13] : memref<8xi32, #tpu.memory_space<smem>>
    %c0_i32_10 = arith.constant 0 : i32
    %c1_i32_11 = arith.constant 1 : i32
    %c0_i32_12 = arith.constant 0 : i32
    %15 = tpu.memref_slice %arg2[%14, %c0_i32_12] : memref<28x3xf32, #tpu.memory_space<any>> -> memref<1x3xf32, #tpu.memory_space<any>>
    %c1_i32_13 = arith.constant 1 : i32
    %c0_i32_14 = arith.constant 0 : i32
    %16 = tpu.memref_slice %arg4[%c1_i32_13, %c0_i32_14] : memref<8x3xf32, #tpu.memory_space<vmem>> -> memref<1x3xf32, #tpu.memory_space<vmem>>
    %17 = tpu.memref_slice %arg6[%c0_i32_10, %c1_i32_11] : memref<2x8x!tpu.dma_semaphore, #tpu.memory_space<semaphore_mem>> -> memref<1x1x!tpu.dma_semaphore, #tpu.memory_space<semaphore_mem>>
    %18 = tpu.memref_squeeze %17 : memref<1x1x!tpu.dma_semaphore, #tpu.memory_space<semaphore_mem>> -> memref<!tpu.dma_semaphore, #tpu.memory_space<semaphore_mem>>
    tpu.enqueue_dma source(%15 : memref<1x3xf32, #tpu.memory_space<any>>) target(%16 : memref<1x3xf32, #tpu.memory_space<vmem>>) target_semaphore(%18 : memref<!tpu.dma_semaphore, #tpu.memory_space<semaphore_mem>>)
    %c1_i32_15 = arith.constant 1 : i32
    %c1_i32_16 = arith.constant 1 : i32
    %c0_i32_17 = arith.constant 0 : i32
    %19 = tpu.memref_slice %arg3[%14, %c0_i32_17] : memref<28x4xf32, #tpu.memory_space<any>> -> memref<1x4xf32, #tpu.memory_space<any>>
    %c1_i32_18 = arith.constant 1 : i32
    %c0_i32_19 = arith.constant 0 : i32
    %20 = tpu.memref_slice %arg5[%c1_i32_18, %c0_i32_19] : memref<8x4xf32, #tpu.memory_space<vmem>> -> memref<1x4xf32, #tpu.memory_space<vmem>>
    %21 = tpu.memref_slice %arg6[%c1_i32_15, %c1_i32_16] : memref<2x8x!tpu.dma_semaphore, #tpu.memory_space<semaphore_mem>> -> memref<1x1x!tpu.dma_semaphore, #tpu.memory_space<semaphore_mem>>
    %22 = tpu.memref_squeeze %21 : memref<1x1x!tpu.dma_semaphore, #tpu.memory_space<semaphore_mem>> -> memref<!tpu.dma_semaphore, #tpu.memory_space<semaphore_mem>>
    tpu.enqueue_dma source(%19 : memref<1x4xf32, #tpu.memory_space<any>>) target(%20 : memref<1x4xf32, #tpu.memory_space<vmem>>) target_semaphore(%22 : memref<!tpu.dma_semaphore, #tpu.memory_space<semaphore_mem>>)
    %c2_i32 = arith.constant 2 : i32
    %23 = arith.addi %0, %c2_i32 : i32
    %24 = arith.index_cast %23 : i32 to index
    %25 = memref.load %arg1[%24] : memref<8xi32, #tpu.memory_space<smem>>
    %c0_i32_20 = arith.constant 0 : i32
    %c2_i32_21 = arith.constant 2 : i32
    %c0_i32_22 = arith.constant 0 : i32
    %26 = tpu.memref_slice %arg2[%25, %c0_i32_22] : memref<28x3xf32, #tpu.memory_space<any>> -> memref<1x3xf32, #tpu.memory_space<any>>
    %c2_i32_23 = arith.constant 2 : i32
    %c0_i32_24 = arith.constant 0 : i32
    %27 = tpu.memref_slice %arg4[%c2_i32_23, %c0_i32_24] : memref<8x3xf32, #tpu.memory_space<vmem>> -> memref<1x3xf32, #tpu.memory_space<vmem>>
    %28 = tpu.memref_slice %arg6[%c0_i32_20, %c2_i32_21] : memref<2x8x!tpu.dma_semaphore, #tpu.memory_space<semaphore_mem>> -> memref<1x1x!tpu.dma_semaphore, #tpu.memory_space<semaphore_mem>>
    %29 = tpu.memref_squeeze %28 : memref<1x1x!tpu.dma_semaphore, #tpu.memory_space<semaphore_mem>> -> memref<!tpu.dma_semaphore, #tpu.memory_space<semaphore_mem>>
    tpu.enqueue_dma source(%26 : memref<1x3xf32, #tpu.memory_space<any>>) target(%27 : memref<1x3xf32, #tpu.memory_space<vmem>>) target_semaphore(%29 : memref<!tpu.dma_semaphore, #tpu.memory_space<semaphore_mem>>)
    %c1_i32_25 = arith.constant 1 : i32
    %c2_i32_26 = arith.constant 2 : i32
    %c0_i32_27 = arith.constant 0 : i32
    %30 = tpu.memref_slice %arg3[%25, %c0_i32_27] : memref<28x4xf32, #tpu.memory_space<any>> -> memref<1x4xf32, #tpu.memory_space<any>>
    %c2_i32_28 = arith.constant 2 : i32
    %c0_i32_29 = arith.constant 0 : i32
    %31 = tpu.memref_slice %arg5[%c2_i32_28, %c0_i32_29] : memref<8x4xf32, #tpu.memory_space<vmem>> -> memref<1x4xf32, #tpu.memory_space<vmem>>
    %32 = tpu.memref_slice %arg6[%c1_i32_25, %c2_i32_26] : memref<2x8x!tpu.dma_semaphore, #tpu.memory_space<semaphore_mem>> -> memref<1x1x!tpu.dma_semaphore, #tpu.memory_space<semaphore_mem>>
    %33 = tpu.memref_squeeze %32 : memref<1x1x!tpu.dma_semaphore, #tpu.memory_space<semaphore_mem>> -> memref<!tpu.dma_semaphore, #tpu.memory_space<semaphore_mem>>
    tpu.enqueue_dma source(%30 : memref<1x4xf32, #tpu.memory_space<any>>) target(%31 : memref<1x4xf32, #tpu.memory_space<vmem>>) target_semaphore(%33 : memref<!tpu.dma_semaphore, #tpu.memory_space<semaphore_mem>>)
    %c3_i32 = arith.constant 3 : i32
    %34 = arith.addi %0, %c3_i32 : i32
    %35 = arith.index_cast %34 : i32 to index
    %36 = memref.load %arg1[%35] : memref<8xi32, #tpu.memory_space<smem>>
    %c0_i32_30 = arith.constant 0 : i32
    %c3_i32_31 = arith.constant 3 : i32
    %c0_i32_32 = arith.constant 0 : i32
    %37 = tpu.memref_slice %arg2[%36, %c0_i32_32] : memref<28x3xf32, #tpu.memory_space<any>> -> memref<1x3xf32, #tpu.memory_space<any>>
    %c3_i32_33 = arith.constant 3 : i32
    %c0_i32_34 = arith.constant 0 : i32
    %38 = tpu.memref_slice %arg4[%c3_i32_33, %c0_i32_34] : memref<8x3xf32, #tpu.memory_space<vmem>> -> memref<1x3xf32, #tpu.memory_space<vmem>>
    %39 = tpu.memref_slice %arg6[%c0_i32_30, %c3_i32_31] : memref<2x8x!tpu.dma_semaphore, #tpu.memory_space<semaphore_mem>> -> memref<1x1x!tpu.dma_semaphore, #tpu.memory_space<semaphore_mem>>
    %40 = tpu.memref_squeeze %39 : memref<1x1x!tpu.dma_semaphore, #tpu.memory_space<semaphore_mem>> -> memref<!tpu.dma_semaphore, #tpu.memory_space<semaphore_mem>>
    tpu.enqueue_dma source(%37 : memref<1x3xf32, #tpu.memory_space<any>>) target(%38 : memref<1x3xf32, #tpu.memory_space<vmem>>) target_semaphore(%40 : memref<!tpu.dma_semaphore, #tpu.memory_space<semaphore_mem>>)
    %c1_i32_35 = arith.constant 1 : i32
    %c3_i32_36 = arith.constant 3 : i32
    %c0_i32_37 = arith.constant 0 : i32
    %41 = tpu.memref_slice %arg3[%36, %c0_i32_37] : memref<28x4xf32, #tpu.memory_space<any>> -> memref<1x4xf32, #tpu.memory_space<any>>
    %c3_i32_38 = arith.constant 3 : i32
    %c0_i32_39 = arith.constant 0 : i32
    %42 = tpu.memref_slice %arg5[%c3_i32_38, %c0_i32_39] : memref<8x4xf32, #tpu.memory_space<vmem>> -> memref<1x4xf32, #tpu.memory_space<vmem>>
    %43 = tpu.memref_slice %arg6[%c1_i32_35, %c3_i32_36] : memref<2x8x!tpu.dma_semaphore, #tpu.memory_space<semaphore_mem>> -> memref<1x1x!tpu.dma_semaphore, #tpu.memory_space<semaphore_mem>>
    %44 = tpu.memref_squeeze %43 : memref<1x1x!tpu.dma_semaphore, #tpu.memory_space<semaphore_mem>> -> memref<!tpu.dma_semaphore, #tpu.memory_space<semaphore_mem>>
    tpu.enqueue_dma source(%41 : memref<1x4xf32, #tpu.memory_space<any>>) target(%42 : memref<1x4xf32, #tpu.memory_space<vmem>>) target_semaphore(%44 : memref<!tpu.dma_semaphore, #tpu.memory_space<semaphore_mem>>)
    %c4_i32 = arith.constant 4 : i32
    %45 = arith.addi %0, %c4_i32 : i32
    %46 = arith.index_cast %45 : i32 to index
    %47 = memref.load %arg1[%46] : memref<8xi32, #tpu.memory_space<smem>>
    %c0_i32_40 = arith.constant 0 : i32
    %c4_i32_41 = arith.constant 4 : i32
    %c0_i32_42 = arith.constant 0 : i32
    %48 = tpu.memref_slice %arg2[%47, %c0_i32_42] : memref<28x3xf32, #tpu.memory_space<any>> -> memref<1x3xf32, #tpu.memory_space<any>>
    %c4_i32_43 = arith.constant 4 : i32
    %c0_i32_44 = arith.constant 0 : i32
    %49 = tpu.memref_slice %arg4[%c4_i32_43, %c0_i32_44] : memref<8x3xf32, #tpu.memory_space<vmem>> -> memref<1x3xf32, #tpu.memory_space<vmem>>
    %50 = tpu.memref_slice %arg6[%c0_i32_40, %c4_i32_41] : memref<2x8x!tpu.dma_semaphore, #tpu.memory_space<semaphore_mem>> -> memref<1x1x!tpu.dma_semaphore, #tpu.memory_space<semaphore_mem>>
    %51 = tpu.memref_squeeze %50 : memref<1x1x!tpu.dma_semaphore, #tpu.memory_space<semaphore_mem>> -> memref<!tpu.dma_semaphore, #tpu.memory_space<semaphore_mem>>
    tpu.enqueue_dma source(%48 : memref<1x3xf32, #tpu.memory_space<any>>) target(%49 : memref<1x3xf32, #tpu.memory_space<vmem>>) target_semaphore(%51 : memref<!tpu.dma_semaphore, #tpu.memory_space<semaphore_mem>>)
    %c1_i32_45 = arith.constant 1 : i32
    %c4_i32_46 = arith.constant 4 : i32
    %c0_i32_47 = arith.constant 0 : i32
    %52 = tpu.memref_slice %arg3[%47, %c0_i32_47] : memref<28x4xf32, #tpu.memory_space<any>> -> memref<1x4xf32, #tpu.memory_space<any>>
    %c4_i32_48 = arith.constant 4 : i32
    %c0_i32_49 = arith.constant 0 : i32
    %53 = tpu.memref_slice %arg5[%c4_i32_48, %c0_i32_49] : memref<8x4xf32, #tpu.memory_space<vmem>> -> memref<1x4xf32, #tpu.memory_space<vmem>>
    %54 = tpu.memref_slice %arg6[%c1_i32_45, %c4_i32_46] : memref<2x8x!tpu.dma_semaphore, #tpu.memory_space<semaphore_mem>> -> memref<1x1x!tpu.dma_semaphore, #tpu.memory_space<semaphore_mem>>
    %55 = tpu.memref_squeeze %54 : memref<1x1x!tpu.dma_semaphore, #tpu.memory_space<semaphore_mem>> -> memref<!tpu.dma_semaphore, #tpu.memory_space<semaphore_mem>>
    tpu.enqueue_dma source(%52 : memref<1x4xf32, #tpu.memory_space<any>>) target(%53 : memref<1x4xf32, #tpu.memory_space<vmem>>) target_semaphore(%55 : memref<!tpu.dma_semaphore, #tpu.memory_space<semaphore_mem>>)
    %c5_i32 = arith.constant 5 : i32
    %56 = arith.addi %0, %c5_i32 : i32
    %57 = arith.index_cast %56 : i32 to index
    %58 = memref.load %arg1[%57] : memref<8xi32, #tpu.memory_space<smem>>
    %c0_i32_50 = arith.constant 0 : i32
    %c5_i32_51 = arith.constant 5 : i32
    %c0_i32_52 = arith.constant 0 : i32
    %59 = tpu.memref_slice %arg2[%58, %c0_i32_52] : memref<28x3xf32, #tpu.memory_space<any>> -> memref<1x3xf32, #tpu.memory_space<any>>
    %c5_i32_53 = arith.constant 5 : i32
    %c0_i32_54 = arith.constant 0 : i32
    %60 = tpu.memref_slice %arg4[%c5_i32_53, %c0_i32_54] : memref<8x3xf32, #tpu.memory_space<vmem>> -> memref<1x3xf32, #tpu.memory_space<vmem>>
    %61 = tpu.memref_slice %arg6[%c0_i32_50, %c5_i32_51] : memref<2x8x!tpu.dma_semaphore, #tpu.memory_space<semaphore_mem>> -> memref<1x1x!tpu.dma_semaphore, #tpu.memory_space<semaphore_mem>>
    %62 = tpu.memref_squeeze %61 : memref<1x1x!tpu.dma_semaphore, #tpu.memory_space<semaphore_mem>> -> memref<!tpu.dma_semaphore, #tpu.memory_space<semaphore_mem>>
    tpu.enqueue_dma source(%59 : memref<1x3xf32, #tpu.memory_space<any>>) target(%60 : memref<1x3xf32, #tpu.memory_space<vmem>>) target_semaphore(%62 : memref<!tpu.dma_semaphore, #tpu.memory_space<semaphore_mem>>)
    %c1_i32_55 = arith.constant 1 : i32
    %c5_i32_56 = arith.constant 5 : i32
    %c0_i32_57 = arith.constant 0 : i32
    %63 = tpu.memref_slice %arg3[%58, %c0_i32_57] : memref<28x4xf32, #tpu.memory_space<any>> -> memref<1x4xf32, #tpu.memory_space<any>>
    %c5_i32_58 = arith.constant 5 : i32
    %c0_i32_59 = arith.constant 0 : i32
    %64 = tpu.memref_slice %arg5[%c5_i32_58, %c0_i32_59] : memref<8x4xf32, #tpu.memory_space<vmem>> -> memref<1x4xf32, #tpu.memory_space<vmem>>
    %65 = tpu.memref_slice %arg6[%c1_i32_55, %c5_i32_56] : memref<2x8x!tpu.dma_semaphore, #tpu.memory_space<semaphore_mem>> -> memref<1x1x!tpu.dma_semaphore, #tpu.memory_space<semaphore_mem>>
    %66 = tpu.memref_squeeze %65 : memref<1x1x!tpu.dma_semaphore, #tpu.memory_space<semaphore_mem>> -> memref<!tpu.dma_semaphore, #tpu.memory_space<semaphore_mem>>
    tpu.enqueue_dma source(%63 : memref<1x4xf32, #tpu.memory_space<any>>) target(%64 : memref<1x4xf32, #tpu.memory_space<vmem>>) target_semaphore(%66 : memref<!tpu.dma_semaphore, #tpu.memory_space<semaphore_mem>>)
    %c6_i32 = arith.constant 6 : i32
    %67 = arith.addi %0, %c6_i32 : i32
    %68 = arith.index_cast %67 : i32 to index
    %69 = memref.load %arg1[%68] : memref<8xi32, #tpu.memory_space<smem>>
    %c0_i32_60 = arith.constant 0 : i32
    %c6_i32_61 = arith.constant 6 : i32
    %c0_i32_62 = arith.constant 0 : i32
    %70 = tpu.memref_slice %arg2[%69, %c0_i32_62] : memref<28x3xf32, #tpu.memory_space<any>> -> memref<1x3xf32, #tpu.memory_space<any>>
    %c6_i32_63 = arith.constant 6 : i32
    %c0_i32_64 = arith.constant 0 : i32
    %71 = tpu.memref_slice %arg4[%c6_i32_63, %c0_i32_64] : memref<8x3xf32, #tpu.memory_space<vmem>> -> memref<1x3xf32, #tpu.memory_space<vmem>>
    %72 = tpu.memref_slice %arg6[%c0_i32_60, %c6_i32_61] : memref<2x8x!tpu.dma_semaphore, #tpu.memory_space<semaphore_mem>> -> memref<1x1x!tpu.dma_semaphore, #tpu.memory_space<semaphore_mem>>
    %73 = tpu.memref_squeeze %72 : memref<1x1x!tpu.dma_semaphore, #tpu.memory_space<semaphore_mem>> -> memref<!tpu.dma_semaphore, #tpu.memory_space<semaphore_mem>>
    tpu.enqueue_dma source(%70 : memref<1x3xf32, #tpu.memory_space<any>>) target(%71 : memref<1x3xf32, #tpu.memory_space<vmem>>) target_semaphore(%73 : memref<!tpu.dma_semaphore, #tpu.memory_space<semaphore_mem>>)
    %c1_i32_65 = arith.constant 1 : i32
    %c6_i32_66 = arith.constant 6 : i32
    %c0_i32_67 = arith.constant 0 : i32
    %74 = tpu.memref_slice %arg3[%69, %c0_i32_67] : memref<28x4xf32, #tpu.memory_space<any>> -> memref<1x4xf32, #tpu.memory_space<any>>
    %c6_i32_68 = arith.constant 6 : i32
    %c0_i32_69 = arith.constant 0 : i32
    %75 = tpu.memref_slice %arg5[%c6_i32_68, %c0_i32_69] : memref<8x4xf32, #tpu.memory_space<vmem>> -> memref<1x4xf32, #tpu.memory_space<vmem>>
    %76 = tpu.memref_slice %arg6[%c1_i32_65, %c6_i32_66] : memref<2x8x!tpu.dma_semaphore, #tpu.memory_space<semaphore_mem>> -> memref<1x1x!tpu.dma_semaphore, #tpu.memory_space<semaphore_mem>>
    %77 = tpu.memref_squeeze %76 : memref<1x1x!tpu.dma_semaphore, #tpu.memory_space<semaphore_mem>> -> memref<!tpu.dma_semaphore, #tpu.memory_space<semaphore_mem>>
    tpu.enqueue_dma source(%74 : memref<1x4xf32, #tpu.memory_space<any>>) target(%75 : memref<1x4xf32, #tpu.memory_space<vmem>>) target_semaphore(%77 : memref<!tpu.dma_semaphore, #tpu.memory_space<semaphore_mem>>)
    %c7_i32 = arith.constant 7 : i32
    %78 = arith.addi %0, %c7_i32 : i32
    %79 = arith.index_cast %78 : i32 to index
    %80 = memref.load %arg1[%79] : memref<8xi32, #tpu.memory_space<smem>>
    %c0_i32_70 = arith.constant 0 : i32
    %c7_i32_71 = arith.constant 7 : i32
    %c0_i32_72 = arith.constant 0 : i32
    %81 = tpu.memref_slice %arg2[%80, %c0_i32_72] : memref<28x3xf32, #tpu.memory_space<any>> -> memref<1x3xf32, #tpu.memory_space<any>>
    %c7_i32_73 = arith.constant 7 : i32
    %c0_i32_74 = arith.constant 0 : i32
    %82 = tpu.memref_slice %arg4[%c7_i32_73, %c0_i32_74] : memref<8x3xf32, #tpu.memory_space<vmem>> -> memref<1x3xf32, #tpu.memory_space<vmem>>
    %83 = tpu.memref_slice %arg6[%c0_i32_70, %c7_i32_71] : memref<2x8x!tpu.dma_semaphore, #tpu.memory_space<semaphore_mem>> -> memref<1x1x!tpu.dma_semaphore, #tpu.memory_space<semaphore_mem>>
    %84 = tpu.memref_squeeze %83 : memref<1x1x!tpu.dma_semaphore, #tpu.memory_space<semaphore_mem>> -> memref<!tpu.dma_semaphore, #tpu.memory_space<semaphore_mem>>
    tpu.enqueue_dma source(%81 : memref<1x3xf32, #tpu.memory_space<any>>) target(%82 : memref<1x3xf32, #tpu.memory_space<vmem>>) target_semaphore(%84 : memref<!tpu.dma_semaphore, #tpu.memory_space<semaphore_mem>>)
    %c1_i32_75 = arith.constant 1 : i32
    %c7_i32_76 = arith.constant 7 : i32
    %c0_i32_77 = arith.constant 0 : i32
    %85 = tpu.memref_slice %arg3[%80, %c0_i32_77] : memref<28x4xf32, #tpu.memory_space<any>> -> memref<1x4xf32, #tpu.memory_space<any>>
    %c7_i32_78 = arith.constant 7 : i32
    %c0_i32_79 = arith.constant 0 : i32
    %86 = tpu.memref_slice %arg5[%c7_i32_78, %c0_i32_79] : memref<8x4xf32, #tpu.memory_space<vmem>> -> memref<1x4xf32, #tpu.memory_space<vmem>>
    %87 = tpu.memref_slice %arg6[%c1_i32_75, %c7_i32_76] : memref<2x8x!tpu.dma_semaphore, #tpu.memory_space<semaphore_mem>> -> memref<1x1x!tpu.dma_semaphore, #tpu.memory_space<semaphore_mem>>
    %88 = tpu.memref_squeeze %87 : memref<1x1x!tpu.dma_semaphore, #tpu.memory_space<semaphore_mem>> -> memref<!tpu.dma_semaphore, #tpu.memory_space<semaphore_mem>>
    tpu.enqueue_dma source(%85 : memref<1x4xf32, #tpu.memory_space<any>>) target(%86 : memref<1x4xf32, #tpu.memory_space<vmem>>) target_semaphore(%88 : memref<!tpu.dma_semaphore, #tpu.memory_space<semaphore_mem>>)
    %c0_i32_80 = arith.constant 0 : i32
    %c0_i32_81 = arith.constant 0 : i32
    %c0_i32_82 = arith.constant 0 : i32
    %89 = tpu.memref_slice %arg2[%3, %c0_i32_82] : memref<28x3xf32, #tpu.memory_space<any>> -> memref<1x3xf32, #tpu.memory_space<any>>
    %c0_i32_83 = arith.constant 0 : i32
    %c0_i32_84 = arith.constant 0 : i32
    %90 = tpu.memref_slice %arg4[%c0_i32_83, %c0_i32_84] : memref<8x3xf32, #tpu.memory_space<vmem>> -> memref<1x3xf32, #tpu.memory_space<vmem>>
    %91 = tpu.memref_slice %arg6[%c0_i32_80, %c0_i32_81] : memref<2x8x!tpu.dma_semaphore, #tpu.memory_space<semaphore_mem>> -> memref<1x1x!tpu.dma_semaphore, #tpu.memory_space<semaphore_mem>>
    %92 = tpu.memref_squeeze %91 : memref<1x1x!tpu.dma_semaphore, #tpu.memory_space<semaphore_mem>> -> memref<!tpu.dma_semaphore, #tpu.memory_space<semaphore_mem>>
    tpu.wait_dma2 semaphore(%92 : memref<!tpu.dma_semaphore, #tpu.memory_space<semaphore_mem>>) src(%89 : memref<1x3xf32, #tpu.memory_space<any>>) dst(%90 : memref<1x3xf32, #tpu.memory_space<vmem>>)
    %c1_i32_85 = arith.constant 1 : i32
    %c0_i32_86 = arith.constant 0 : i32
    %c0_i32_87 = arith.constant 0 : i32
    %93 = tpu.memref_slice %arg3[%3, %c0_i32_87] : memref<28x4xf32, #tpu.memory_space<any>> -> memref<1x4xf32, #tpu.memory_space<any>>
    %c0_i32_88 = arith.constant 0 : i32
    %c0_i32_89 = arith.constant 0 : i32
    %94 = tpu.memref_slice %arg5[%c0_i32_88, %c0_i32_89] : memref<8x4xf32, #tpu.memory_space<vmem>> -> memref<1x4xf32, #tpu.memory_space<vmem>>
    %95 = tpu.memref_slice %arg6[%c1_i32_85, %c0_i32_86] : memref<2x8x!tpu.dma_semaphore, #tpu.memory_space<semaphore_mem>> -> memref<1x1x!tpu.dma_semaphore, #tpu.memory_space<semaphore_mem>>
    %96 = tpu.memref_squeeze %95 : memref<1x1x!tpu.dma_semaphore, #tpu.memory_space<semaphore_mem>> -> memref<!tpu.dma_semaphore, #tpu.memory_space<semaphore_mem>>
    tpu.wait_dma2 semaphore(%96 : memref<!tpu.dma_semaphore, #tpu.memory_space<semaphore_mem>>) src(%93 : memref<1x4xf32, #tpu.memory_space<any>>) dst(%94 : memref<1x4xf32, #tpu.memory_space<vmem>>)
    %c0_i32_90 = arith.constant 0 : i32
    %c1_i32_91 = arith.constant 1 : i32
    %c0_i32_92 = arith.constant 0 : i32
    %97 = tpu.memref_slice %arg2[%14, %c0_i32_92] : memref<28x3xf32, #tpu.memory_space<any>> -> memref<1x3xf32, #tpu.memory_space<any>>
    %c1_i32_93 = arith.constant 1 : i32
    %c0_i32_94 = arith.constant 0 : i32
    %98 = tpu.memref_slice %arg4[%c1_i32_93, %c0_i32_94] : memref<8x3xf32, #tpu.memory_space<vmem>> -> memref<1x3xf32, #tpu.memory_space<vmem>>
    %99 = tpu.memref_slice %arg6[%c0_i32_90, %c1_i32_91] : memref<2x8x!tpu.dma_semaphore, #tpu.memory_space<semaphore_mem>> -> memref<1x1x!tpu.dma_semaphore, #tpu.memory_space<semaphore_mem>>
    %100 = tpu.memref_squeeze %99 : memref<1x1x!tpu.dma_semaphore, #tpu.memory_space<semaphore_mem>> -> memref<!tpu.dma_semaphore, #tpu.memory_space<semaphore_mem>>
    tpu.wait_dma2 semaphore(%100 : memref<!tpu.dma_semaphore, #tpu.memory_space<semaphore_mem>>) src(%97 : memref<1x3xf32, #tpu.memory_space<any>>) dst(%98 : memref<1x3xf32, #tpu.memory_space<vmem>>)
    %c1_i32_95 = arith.constant 1 : i32
    %c1_i32_96 = arith.constant 1 : i32
    %c0_i32_97 = arith.constant 0 : i32
    %101 = tpu.memref_slice %arg3[%14, %c0_i32_97] : memref<28x4xf32, #tpu.memory_space<any>> -> memref<1x4xf32, #tpu.memory_space<any>>
    %c1_i32_98 = arith.constant 1 : i32
    %c0_i32_99 = arith.constant 0 : i32
    %102 = tpu.memref_slice %arg5[%c1_i32_98, %c0_i32_99] : memref<8x4xf32, #tpu.memory_space<vmem>> -> memref<1x4xf32, #tpu.memory_space<vmem>>
    %103 = tpu.memref_slice %arg6[%c1_i32_95, %c1_i32_96] : memref<2x8x!tpu.dma_semaphore, #tpu.memory_space<semaphore_mem>> -> memref<1x1x!tpu.dma_semaphore, #tpu.memory_space<semaphore_mem>>
    %104 = tpu.memref_squeeze %103 : memref<1x1x!tpu.dma_semaphore, #tpu.memory_space<semaphore_mem>> -> memref<!tpu.dma_semaphore, #tpu.memory_space<semaphore_mem>>
    tpu.wait_dma2 semaphore(%104 : memref<!tpu.dma_semaphore, #tpu.memory_space<semaphore_mem>>) src(%101 : memref<1x4xf32, #tpu.memory_space<any>>) dst(%102 : memref<1x4xf32, #tpu.memory_space<vmem>>)
    %c0_i32_100 = arith.constant 0 : i32
    %c2_i32_101 = arith.constant 2 : i32
    %c0_i32_102 = arith.constant 0 : i32
    %105 = tpu.memref_slice %arg2[%25, %c0_i32_102] : memref<28x3xf32, #tpu.memory_space<any>> -> memref<1x3xf32, #tpu.memory_space<any>>
    %c2_i32_103 = arith.constant 2 : i32
    %c0_i32_104 = arith.constant 0 : i32
    %106 = tpu.memref_slice %arg4[%c2_i32_103, %c0_i32_104] : memref<8x3xf32, #tpu.memory_space<vmem>> -> memref<1x3xf32, #tpu.memory_space<vmem>>
    %107 = tpu.memref_slice %arg6[%c0_i32_100, %c2_i32_101] : memref<2x8x!tpu.dma_semaphore, #tpu.memory_space<semaphore_mem>> -> memref<1x1x!tpu.dma_semaphore, #tpu.memory_space<semaphore_mem>>
    %108 = tpu.memref_squeeze %107 : memref<1x1x!tpu.dma_semaphore, #tpu.memory_space<semaphore_mem>> -> memref<!tpu.dma_semaphore, #tpu.memory_space<semaphore_mem>>
    tpu.wait_dma2 semaphore(%108 : memref<!tpu.dma_semaphore, #tpu.memory_space<semaphore_mem>>) src(%105 : memref<1x3xf32, #tpu.memory_space<any>>) dst(%106 : memref<1x3xf32, #tpu.memory_space<vmem>>)
    %c1_i32_105 = arith.constant 1 : i32
    %c2_i32_106 = arith.constant 2 : i32
    %c0_i32_107 = arith.constant 0 : i32
    %109 = tpu.memref_slice %arg3[%25, %c0_i32_107] : memref<28x4xf32, #tpu.memory_space<any>> -> memref<1x4xf32, #tpu.memory_space<any>>
    %c2_i32_108 = arith.constant 2 : i32
    %c0_i32_109 = arith.constant 0 : i32
    %110 = tpu.memref_slice %arg5[%c2_i32_108, %c0_i32_109] : memref<8x4xf32, #tpu.memory_space<vmem>> -> memref<1x4xf32, #tpu.memory_space<vmem>>
    %111 = tpu.memref_slice %arg6[%c1_i32_105, %c2_i32_106] : memref<2x8x!tpu.dma_semaphore, #tpu.memory_space<semaphore_mem>> -> memref<1x1x!tpu.dma_semaphore, #tpu.memory_space<semaphore_mem>>
    %112 = tpu.memref_squeeze %111 : memref<1x1x!tpu.dma_semaphore, #tpu.memory_space<semaphore_mem>> -> memref<!tpu.dma_semaphore, #tpu.memory_space<semaphore_mem>>
    tpu.wait_dma2 semaphore(%112 : memref<!tpu.dma_semaphore, #tpu.memory_space<semaphore_mem>>) src(%109 : memref<1x4xf32, #tpu.memory_space<any>>) dst(%110 : memref<1x4xf32, #tpu.memory_space<vmem>>)
    %c0_i32_110 = arith.constant 0 : i32
    %c3_i32_111 = arith.constant 3 : i32
    %c0_i32_112 = arith.constant 0 : i32
    %113 = tpu.memref_slice %arg2[%36, %c0_i32_112] : memref<28x3xf32, #tpu.memory_space<any>> -> memref<1x3xf32, #tpu.memory_space<any>>
    %c3_i32_113 = arith.constant 3 : i32
    %c0_i32_114 = arith.constant 0 : i32
    %114 = tpu.memref_slice %arg4[%c3_i32_113, %c0_i32_114] : memref<8x3xf32, #tpu.memory_space<vmem>> -> memref<1x3xf32, #tpu.memory_space<vmem>>
    %115 = tpu.memref_slice %arg6[%c0_i32_110, %c3_i32_111] : memref<2x8x!tpu.dma_semaphore, #tpu.memory_space<semaphore_mem>> -> memref<1x1x!tpu.dma_semaphore, #tpu.memory_space<semaphore_mem>>
    %116 = tpu.memref_squeeze %115 : memref<1x1x!tpu.dma_semaphore, #tpu.memory_space<semaphore_mem>> -> memref<!tpu.dma_semaphore, #tpu.memory_space<semaphore_mem>>
    tpu.wait_dma2 semaphore(%116 : memref<!tpu.dma_semaphore, #tpu.memory_space<semaphore_mem>>) src(%113 : memref<1x3xf32, #tpu.memory_space<any>>) dst(%114 : memref<1x3xf32, #tpu.memory_space<vmem>>)
    %c1_i32_115 = arith.constant 1 : i32
    %c3_i32_116 = arith.constant 3 : i32
    %c0_i32_117 = arith.constant 0 : i32
    %117 = tpu.memref_slice %arg3[%36, %c0_i32_117] : memref<28x4xf32, #tpu.memory_space<any>> -> memref<1x4xf32, #tpu.memory_space<any>>
    %c3_i32_118 = arith.constant 3 : i32
    %c0_i32_119 = arith.constant 0 : i32
    %118 = tpu.memref_slice %arg5[%c3_i32_118, %c0_i32_119] : memref<8x4xf32, #tpu.memory_space<vmem>> -> memref<1x4xf32, #tpu.memory_space<vmem>>
    %119 = tpu.memref_slice %arg6[%c1_i32_115, %c3_i32_116] : memref<2x8x!tpu.dma_semaphore, #tpu.memory_space<semaphore_mem>> -> memref<1x1x!tpu.dma_semaphore, #tpu.memory_space<semaphore_mem>>
    %120 = tpu.memref_squeeze %119 : memref<1x1x!tpu.dma_semaphore, #tpu.memory_space<semaphore_mem>> -> memref<!tpu.dma_semaphore, #tpu.memory_space<semaphore_mem>>
    tpu.wait_dma2 semaphore(%120 : memref<!tpu.dma_semaphore, #tpu.memory_space<semaphore_mem>>) src(%117 : memref<1x4xf32, #tpu.memory_space<any>>) dst(%118 : memref<1x4xf32, #tpu.memory_space<vmem>>)
    %c0_i32_120 = arith.constant 0 : i32
    %c4_i32_121 = arith.constant 4 : i32
    %c0_i32_122 = arith.constant 0 : i32
    %121 = tpu.memref_slice %arg2[%47, %c0_i32_122] : memref<28x3xf32, #tpu.memory_space<any>> -> memref<1x3xf32, #tpu.memory_space<any>>
    %c4_i32_123 = arith.constant 4 : i32
    %c0_i32_124 = arith.constant 0 : i32
    %122 = tpu.memref_slice %arg4[%c4_i32_123, %c0_i32_124] : memref<8x3xf32, #tpu.memory_space<vmem>> -> memref<1x3xf32, #tpu.memory_space<vmem>>
    %123 = tpu.memref_slice %arg6[%c0_i32_120, %c4_i32_121] : memref<2x8x!tpu.dma_semaphore, #tpu.memory_space<semaphore_mem>> -> memref<1x1x!tpu.dma_semaphore, #tpu.memory_space<semaphore_mem>>
    %124 = tpu.memref_squeeze %123 : memref<1x1x!tpu.dma_semaphore, #tpu.memory_space<semaphore_mem>> -> memref<!tpu.dma_semaphore, #tpu.memory_space<semaphore_mem>>
    tpu.wait_dma2 semaphore(%124 : memref<!tpu.dma_semaphore, #tpu.memory_space<semaphore_mem>>) src(%121 : memref<1x3xf32, #tpu.memory_space<any>>) dst(%122 : memref<1x3xf32, #tpu.memory_space<vmem>>)
    %c1_i32_125 = arith.constant 1 : i32
    %c4_i32_126 = arith.constant 4 : i32
    %c0_i32_127 = arith.constant 0 : i32
    %125 = tpu.memref_slice %arg3[%47, %c0_i32_127] : memref<28x4xf32, #tpu.memory_space<any>> -> memref<1x4xf32, #tpu.memory_space<any>>
    %c4_i32_128 = arith.constant 4 : i32
    %c0_i32_129 = arith.constant 0 : i32
    %126 = tpu.memref_slice %arg5[%c4_i32_128, %c0_i32_129] : memref<8x4xf32, #tpu.memory_space<vmem>> -> memref<1x4xf32, #tpu.memory_space<vmem>>
    %127 = tpu.memref_slice %arg6[%c1_i32_125, %c4_i32_126] : memref<2x8x!tpu.dma_semaphore, #tpu.memory_space<semaphore_mem>> -> memref<1x1x!tpu.dma_semaphore, #tpu.memory_space<semaphore_mem>>
    %128 = tpu.memref_squeeze %127 : memref<1x1x!tpu.dma_semaphore, #tpu.memory_space<semaphore_mem>> -> memref<!tpu.dma_semaphore, #tpu.memory_space<semaphore_mem>>
    tpu.wait_dma2 semaphore(%128 : memref<!tpu.dma_semaphore, #tpu.memory_space<semaphore_mem>>) src(%125 : memref<1x4xf32, #tpu.memory_space<any>>) dst(%126 : memref<1x4xf32, #tpu.memory_space<vmem>>)
    %c0_i32_130 = arith.constant 0 : i32
    %c5_i32_131 = arith.constant 5 : i32
    %c0_i32_132 = arith.constant 0 : i32
    %129 = tpu.memref_slice %arg2[%58, %c0_i32_132] : memref<28x3xf32, #tpu.memory_space<any>> -> memref<1x3xf32, #tpu.memory_space<any>>
    %c5_i32_133 = arith.constant 5 : i32
    %c0_i32_134 = arith.constant 0 : i32
    %130 = tpu.memref_slice %arg4[%c5_i32_133, %c0_i32_134] : memref<8x3xf32, #tpu.memory_space<vmem>> -> memref<1x3xf32, #tpu.memory_space<vmem>>
    %131 = tpu.memref_slice %arg6[%c0_i32_130, %c5_i32_131] : memref<2x8x!tpu.dma_semaphore, #tpu.memory_space<semaphore_mem>> -> memref<1x1x!tpu.dma_semaphore, #tpu.memory_space<semaphore_mem>>
    %132 = tpu.memref_squeeze %131 : memref<1x1x!tpu.dma_semaphore, #tpu.memory_space<semaphore_mem>> -> memref<!tpu.dma_semaphore, #tpu.memory_space<semaphore_mem>>
    tpu.wait_dma2 semaphore(%132 : memref<!tpu.dma_semaphore, #tpu.memory_space<semaphore_mem>>) src(%129 : memref<1x3xf32, #tpu.memory_space<any>>) dst(%130 : memref<1x3xf32, #tpu.memory_space<vmem>>)
    %c1_i32_135 = arith.constant 1 : i32
    %c5_i32_136 = arith.constant 5 : i32
    %c0_i32_137 = arith.constant 0 : i32
    %133 = tpu.memref_slice %arg3[%58, %c0_i32_137] : memref<28x4xf32, #tpu.memory_space<any>> -> memref<1x4xf32, #tpu.memory_space<any>>
    %c5_i32_138 = arith.constant 5 : i32
    %c0_i32_139 = arith.constant 0 : i32
    %134 = tpu.memref_slice %arg5[%c5_i32_138, %c0_i32_139] : memref<8x4xf32, #tpu.memory_space<vmem>> -> memref<1x4xf32, #tpu.memory_space<vmem>>
    %135 = tpu.memref_slice %arg6[%c1_i32_135, %c5_i32_136] : memref<2x8x!tpu.dma_semaphore, #tpu.memory_space<semaphore_mem>> -> memref<1x1x!tpu.dma_semaphore, #tpu.memory_space<semaphore_mem>>
    %136 = tpu.memref_squeeze %135 : memref<1x1x!tpu.dma_semaphore, #tpu.memory_space<semaphore_mem>> -> memref<!tpu.dma_semaphore, #tpu.memory_space<semaphore_mem>>
    tpu.wait_dma2 semaphore(%136 : memref<!tpu.dma_semaphore, #tpu.memory_space<semaphore_mem>>) src(%133 : memref<1x4xf32, #tpu.memory_space<any>>) dst(%134 : memref<1x4xf32, #tpu.memory_space<vmem>>)
    %c0_i32_140 = arith.constant 0 : i32
    %c6_i32_141 = arith.constant 6 : i32
    %c0_i32_142 = arith.constant 0 : i32
    %137 = tpu.memref_slice %arg2[%69, %c0_i32_142] : memref<28x3xf32, #tpu.memory_space<any>> -> memref<1x3xf32, #tpu.memory_space<any>>
    %c6_i32_143 = arith.constant 6 : i32
    %c0_i32_144 = arith.constant 0 : i32
    %138 = tpu.memref_slice %arg4[%c6_i32_143, %c0_i32_144] : memref<8x3xf32, #tpu.memory_space<vmem>> -> memref<1x3xf32, #tpu.memory_space<vmem>>
    %139 = tpu.memref_slice %arg6[%c0_i32_140, %c6_i32_141] : memref<2x8x!tpu.dma_semaphore, #tpu.memory_space<semaphore_mem>> -> memref<1x1x!tpu.dma_semaphore, #tpu.memory_space<semaphore_mem>>
    %140 = tpu.memref_squeeze %139 : memref<1x1x!tpu.dma_semaphore, #tpu.memory_space<semaphore_mem>> -> memref<!tpu.dma_semaphore, #tpu.memory_space<semaphore_mem>>
    tpu.wait_dma2 semaphore(%140 : memref<!tpu.dma_semaphore, #tpu.memory_space<semaphore_mem>>) src(%137 : memref<1x3xf32, #tpu.memory_space<any>>) dst(%138 : memref<1x3xf32, #tpu.memory_space<vmem>>)
    %c1_i32_145 = arith.constant 1 : i32
    %c6_i32_146 = arith.constant 6 : i32
    %c0_i32_147 = arith.constant 0 : i32
    %141 = tpu.memref_slice %arg3[%69, %c0_i32_147] : memref<28x4xf32, #tpu.memory_space<any>> -> memref<1x4xf32, #tpu.memory_space<any>>
    %c6_i32_148 = arith.constant 6 : i32
    %c0_i32_149 = arith.constant 0 : i32
    %142 = tpu.memref_slice %arg5[%c6_i32_148, %c0_i32_149] : memref<8x4xf32, #tpu.memory_space<vmem>> -> memref<1x4xf32, #tpu.memory_space<vmem>>
    %143 = tpu.memref_slice %arg6[%c1_i32_145, %c6_i32_146] : memref<2x8x!tpu.dma_semaphore, #tpu.memory_space<semaphore_mem>> -> memref<1x1x!tpu.dma_semaphore, #tpu.memory_space<semaphore_mem>>
    %144 = tpu.memref_squeeze %143 : memref<1x1x!tpu.dma_semaphore, #tpu.memory_space<semaphore_mem>> -> memref<!tpu.dma_semaphore, #tpu.memory_space<semaphore_mem>>
    tpu.wait_dma2 semaphore(%144 : memref<!tpu.dma_semaphore, #tpu.memory_space<semaphore_mem>>) src(%141 : memref<1x4xf32, #tpu.memory_space<any>>) dst(%142 : memref<1x4xf32, #tpu.memory_space<vmem>>)
    %c0_i32_150 = arith.constant 0 : i32
    %c7_i32_151 = arith.constant 7 : i32
    %c0_i32_152 = arith.constant 0 : i32
    %145 = tpu.memref_slice %arg2[%80, %c0_i32_152] : memref<28x3xf32, #tpu.memory_space<any>> -> memref<1x3xf32, #tpu.memory_space<any>>
    %c7_i32_153 = arith.constant 7 : i32
    %c0_i32_154 = arith.constant 0 : i32
    %146 = tpu.memref_slice %arg4[%c7_i32_153, %c0_i32_154] : memref<8x3xf32, #tpu.memory_space<vmem>> -> memref<1x3xf32, #tpu.memory_space<vmem>>
    %147 = tpu.memref_slice %arg6[%c0_i32_150, %c7_i32_151] : memref<2x8x!tpu.dma_semaphore, #tpu.memory_space<semaphore_mem>> -> memref<1x1x!tpu.dma_semaphore, #tpu.memory_space<semaphore_mem>>
    %148 = tpu.memref_squeeze %147 : memref<1x1x!tpu.dma_semaphore, #tpu.memory_space<semaphore_mem>> -> memref<!tpu.dma_semaphore, #tpu.memory_space<semaphore_mem>>
    tpu.wait_dma2 semaphore(%148 : memref<!tpu.dma_semaphore, #tpu.memory_space<semaphore_mem>>) src(%145 : memref<1x3xf32, #tpu.memory_space<any>>) dst(%146 : memref<1x3xf32, #tpu.memory_space<vmem>>)
    %c1_i32_155 = arith.constant 1 : i32
    %c7_i32_156 = arith.constant 7 : i32
    %c0_i32_157 = arith.constant 0 : i32
    %149 = tpu.memref_slice %arg3[%80, %c0_i32_157] : memref<28x4xf32, #tpu.memory_space<any>> -> memref<1x4xf32, #tpu.memory_space<any>>
    %c7_i32_158 = arith.constant 7 : i32
    %c0_i32_159 = arith.constant 0 : i32
    %150 = tpu.memref_slice %arg5[%c7_i32_158, %c0_i32_159] : memref<8x4xf32, #tpu.memory_space<vmem>> -> memref<1x4xf32, #tpu.memory_space<vmem>>
    %151 = tpu.memref_slice %arg6[%c1_i32_155, %c7_i32_156] : memref<2x8x!tpu.dma_semaphore, #tpu.memory_space<semaphore_mem>> -> memref<1x1x!tpu.dma_semaphore, #tpu.memory_space<semaphore_mem>>
    %152 = tpu.memref_squeeze %151 : memref<1x1x!tpu.dma_semaphore, #tpu.memory_space<semaphore_mem>> -> memref<!tpu.dma_semaphore, #tpu.memory_space<semaphore_mem>>
    tpu.wait_dma2 semaphore(%152 : memref<!tpu.dma_semaphore, #tpu.memory_space<semaphore_mem>>) src(%149 : memref<1x4xf32, #tpu.memory_space<any>>) dst(%150 : memref<1x4xf32, #tpu.memory_space<vmem>>)
    return
  }
  func.func @transform_2(%arg0: i32, %arg1: memref<8xi32, #tpu.memory_space<smem>>) -> (i32, i32) {
    %c0_i32 = arith.constant 0 : i32
    %c0_i32_0 = arith.constant 0 : i32
    return %arg0, %c0_i32 : i32, i32
  }
  func.func @transform_3(%arg0: i32, %arg1: memref<8xi32, #tpu.memory_space<smem>>) -> (i32, i32) {
    %c0_i32 = arith.constant 0 : i32
    %c0_i32_0 = arith.constant 0 : i32
    return %arg0, %c0_i32 : i32, i32
  }
}

</mosaic_0001>

<llo_original>
// kernel: tpu_custom_call.1
$region0: #{tpu_custom_call.1}
  #allocation0 [shape = 'u32[]', space=smem, size = 0x4, offset = 0x4, fixed_abs, tag = 'smem constant byte address 0x4 - core index']
  #allocation1 [shape = 'u32[72,128]{1,0:T(1,128)}', space=vmem, size = 0x9000, scoped, tag = 'internal scratch']
  #allocation2 [shape = 's32[16]{0}', space=sflag, size = 0x40, scoped, tag = 'scratch operand']
  #allocation3 [shape = 's32[1]{0}', space=sflag, size = 0x4, scoped, tag = 'scoped memory for tpu_custom_call.1']
  #allocation4 [shape = 'u8[512]{0}', space=smem, size = 0x200, scoped, tag = 'prefetched SMEM operand 0']
  #allocation5 [shape = 's32[]', space=sflag, size = 0x4, offset = 0, fixed_abs, tag = 'sflag constant byte address 0x0 - dummy sync flag']
  #allocation6 [shape = 's32[]', space=sflag, size = 0x4, offset = 0, fixed_abs, tag = 'sflag constant byte address 0x0 - dummy sync flag']
  #allocation7 [shape = 's32[]', space=sflag, size = 0x4, offset = 0, fixed_abs, tag = 'sflag constant byte address 0x0 - dummy sync flag']
  #allocation8 [shape = 's32[]', space=sflag, size = 0x4, offset = 0, fixed_abs, tag = 'sflag constant byte address 0x0 - dummy sync flag']
  #allocation9 [shape = 's32[]', space=sflag, size = 0x4, offset = 0, fixed_abs, tag = 'sflag constant byte address 0x0 - dummy sync flag']
  #allocation10 [shape = 's32[]', space=sflag, size = 0x4, offset = 0, fixed_abs, tag = 'sflag constant byte address 0x0 - dummy sync flag']
  #allocation11 [shape = 's32[]', space=sflag, size = 0x4, offset = 0, fixed_abs, tag = 'sflag constant byte address 0x0 - dummy sync flag']
  #allocation12 [shape = 's32[]', space=sflag, size = 0x4, offset = 0, fixed_abs, tag = 'sflag constant byte address 0x0 - dummy sync flag']
  #allocation13 [shape = 's32[]', space=sflag, size = 0x4, offset = 0, fixed_abs, tag = 'sflag constant byte address 0x0 - dummy sync flag']
  #allocation14 [shape = 's32[]', space=sflag, size = 0x4, offset = 0, fixed_abs, tag = 'sflag constant byte address 0x0 - dummy sync flag']
  #allocation15 [shape = 's32[]', space=sflag, size = 0x4, offset = 0, fixed_abs, tag = 'sflag constant byte address 0x0 - dummy sync flag']
  #allocation16 [shape = 's32[]', space=sflag, size = 0x4, offset = 0, fixed_abs, tag = 'sflag constant byte address 0x0 - dummy sync flag']
  #allocation17 [shape = 's32[]', space=sflag, size = 0x4, offset = 0, fixed_abs, tag = 'sflag constant byte address 0x0 - dummy sync flag']
  #allocation18 [shape = 's32[]', space=sflag, size = 0x4, offset = 0, fixed_abs, tag = 'sflag constant byte address 0x0 - dummy sync flag']
  #allocation19 [shape = 's32[]', space=sflag, size = 0x4, offset = 0, fixed_abs, tag = 'sflag constant byte address 0x0 - dummy sync flag']
  #allocation20 [shape = 's32[]', space=sflag, size = 0x4, offset = 0, fixed_abs, tag = 'sflag constant byte address 0x0 - dummy sync flag']
  %s0 = inlined_call_operand.vmem [shape: s32[8], index: 0, kind: input, shape index: {}]
  %s1 = inlined_call_operand.vmem [shape: f32[28,3], index: 1, kind: input, shape index: {}]
  %s2 = inlined_call_operand.vmem [shape: f32[28,4], index: 2, kind: input, shape index: {}]
  %s3 = inlined_call_operand.vmem [shape: f32[8,3], index: 3, kind: output, shape index: {0}]
  %s4 = inlined_call_operand.vmem [shape: f32[8,4], index: 4, kind: output, shape index: {1}]
  %5 = xla_tuple %s3, %s4
  %s6 = sld [smem:[#allocation0]]
  $region498: #{tpu_custom_call.1} parent=0
    _
  %s8 = ssub.s32 1, %s6
  %s9 = scalar_select 0, %s8, %s6
  %s11 = sshll.u32 %s0, 4
  %s12 = int_to_ptr.vmem [resolvable:$true] %s11
  %14 = dma.vmem_to_smem %s12, 16, [#allocation4], [#allocation3]
  %16 = dma.done [#allocation3], 16
  %17 = sfence
  %s18 = smul.u32 0, 8
  %s19 = sld [smem:[#allocation4 + %s18]]
  %s20 = scalar_lea.vmem %s1, %s19
  // Predicated region
  $region2: #{tpu_custom_call.1} parent=0 // pred_check
    _
  $region3: #{tpu_custom_call.1} parent=0 // pred_check_branch
    %22 = sbr.rel target = $region5
  $region4: #{tpu_custom_call.1} parent=0 // pred_region
    // Predicated region
    $region17: #{tpu_custom_call.1} parent=4 // pred_check
      _
    $region18: #{tpu_custom_call.1} parent=4 // pred_check_branch
      %38 = sbr.rel (0) target = $region20
    $region19: #{tpu_custom_call.1} parent=4 // pred_region
      %s40 = ssub.s32 2, 1
      loop: start=0, step=1, limit=1
      $region21: #{tpu_custom_call.1} parent=19 // loop_pre_header
        _
      $region22: #{tpu_custom_call.1} parent=19 // loop_header
        %s42 = sphi 0, %s46
        %p43 = scmp.ge.s32.totalorder %s42, 1
        %s47 = sphi %s20, %s20
        %s48 = sphi %s3, %s3
      $region23: #{tpu_custom_call.1} parent=19 // loop_header_branch
        %45 = sbr.rel (%p43) target = $region27
      $region24: #{tpu_custom_call.1} parent=19 // loop_body
        %v49 = vld [vmem:[%s47] sm:%s40]
        %50 = vst [vmem:[%s48] sm:%s40] %v49
      $region25: #{tpu_custom_call.1} parent=19 // loop_footer
        %s46 = sadd.s32 1, %s42
      $region26: #{tpu_custom_call.1} parent=19 // loop_footer_branch
        %41 = sbr.rel target = $region22
      $region27: #{tpu_custom_call.1} parent=19 // loop_exit
        _
    $region20: #{tpu_custom_call.1} parent=4 // pred_fallthru
      _
  $region5: #{tpu_custom_call.1} parent=0 // pred_fallthru
    _
  // Predicated region
  $region6: #{tpu_custom_call.1} parent=0 // pred_check
    _
  $region7: #{tpu_custom_call.1} parent=0 // pred_check_branch
    %24 = sbr.rel (0) target = $region9
  $region8: #{tpu_custom_call.1} parent=0 // pred_region
    %s26 = ssub.s32 2, 1
    loop: start=0, step=1, limit=1
    $region10: #{tpu_custom_call.1} parent=8 // loop_pre_header
      _
    $region11: #{tpu_custom_call.1} parent=8 // loop_header
      %s28 = sphi 0, %s32
      %p29 = scmp.ge.s32.totalorder %s28, 1
      %s33 = sphi %s20, %s20
      %s34 = sphi %s3, %s3
    $region12: #{tpu_custom_call.1} parent=8 // loop_header_branch
      %31 = sbr.rel (%p29) target = $region16
    $region13: #{tpu_custom_call.1} parent=8 // loop_body
      %v35 = vld [vmem:[%s33] sm:%s26]
      %36 = vst [vmem:[%s34] sm:%s26] %v35
    $region14: #{tpu_custom_call.1} parent=8 // loop_footer
      %s32 = sadd.s32 1, %s28
    $region15: #{tpu_custom_call.1} parent=8 // loop_footer_branch
      %27 = sbr.rel target = $region11
    $region16: #{tpu_custom_call.1} parent=8 // loop_exit
      _
  $region9: #{tpu_custom_call.1} parent=0 // pred_fallthru
    _
  // Predicated region
  $region28: #{tpu_custom_call.1} parent=0 // pred_check
    _
  $region29: #{tpu_custom_call.1} parent=0 // pred_check_branch
    %53 = sbr.rel (0) target = $region31
  $region30: #{tpu_custom_call.1} parent=0 // pred_region
    %54 = vsyncadd [#allocation2], 16
  $region31: #{tpu_custom_call.1} parent=0 // pred_fallthru
    _
  %s55 = scalar_lea.vmem %s2, %s19
  %s56 = scalar_lea.sflag [#allocation2], 8
  // Predicated region
  $region32: #{tpu_custom_call.1} parent=0 // pred_check
    _
  $region33: #{tpu_custom_call.1} parent=0 // pred_check_branch
    %58 = sbr.rel target = $region35
  $region34: #{tpu_custom_call.1} parent=0 // pred_region
    // Predicated region
    $region47: #{tpu_custom_call.1} parent=34 // pred_check
      _
    $region48: #{tpu_custom_call.1} parent=34 // pred_check_branch
      %74 = sbr.rel (0) target = $region50
    $region49: #{tpu_custom_call.1} parent=34 // pred_region
      %s76 = ssub.s32 2, 1
      loop: start=0, step=1, limit=1
      $region51: #{tpu_custom_call.1} parent=49 // loop_pre_header
        _
      $region52: #{tpu_custom_call.1} parent=49 // loop_header
        %s78 = sphi 0, %s82
        %p79 = scmp.ge.s32.totalorder %s78, 1
        %s83 = sphi %s55, %s55
        %s84 = sphi %s4, %s4
      $region53: #{tpu_custom_call.1} parent=49 // loop_header_branch
        %81 = sbr.rel (%p79) target = $region57
      $region54: #{tpu_custom_call.1} parent=49 // loop_body
        %v85 = vld [vmem:[%s83] sm:%s76]
        %86 = vst [vmem:[%s84] sm:%s76] %v85
      $region55: #{tpu_custom_call.1} parent=49 // loop_footer
        %s82 = sadd.s32 1, %s78
      $region56: #{tpu_custom_call.1} parent=49 // loop_footer_branch
        %77 = sbr.rel target = $region52
      $region57: #{tpu_custom_call.1} parent=49 // loop_exit
        _
    $region50: #{tpu_custom_call.1} parent=34 // pred_fallthru
      _
  $region35: #{tpu_custom_call.1} parent=0 // pred_fallthru
    _
  // Predicated region
  $region36: #{tpu_custom_call.1} parent=0 // pred_check
    _
  $region37: #{tpu_custom_call.1} parent=0 // pred_check_branch
    %60 = sbr.rel (0) target = $region39
  $region38: #{tpu_custom_call.1} parent=0 // pred_region
    %s62 = ssub.s32 2, 1
    loop: start=0, step=1, limit=1
    $region40: #{tpu_custom_call.1} parent=38 // loop_pre_header
      _
    $region41: #{tpu_custom_call.1} parent=38 // loop_header
      %s64 = sphi 0, %s68
      %p65 = scmp.ge.s32.totalorder %s64, 1
      %s69 = sphi %s55, %s55
      %s70 = sphi %s4, %s4
    $region42: #{tpu_custom_call.1} parent=38 // loop_header_branch
      %67 = sbr.rel (%p65) target = $region46
    $region43: #{tpu_custom_call.1} parent=38 // loop_body
      %v71 = vld [vmem:[%s69] sm:%s62]
      %72 = vst [vmem:[%s70] sm:%s62] %v71
    $region44: #{tpu_custom_call.1} parent=38 // loop_footer
      %s68 = sadd.s32 1, %s64
    $region45: #{tpu_custom_call.1} parent=38 // loop_footer_branch
      %63 = sbr.rel target = $region41
    $region46: #{tpu_custom_call.1} parent=38 // loop_exit
      _
  $region39: #{tpu_custom_call.1} parent=0 // pred_fallthru
    _
  // Predicated region
  $region58: #{tpu_custom_call.1} parent=0 // pred_check
    _
  $region59: #{tpu_custom_call.1} parent=0 // pred_check_branch
    %89 = sbr.rel (0) target = $region61
  $region60: #{tpu_custom_call.1} parent=0 // pred_region
    %90 = vsyncadd %s56, 16
  $region61: #{tpu_custom_call.1} parent=0 // pred_fallthru
    _
  %s91 = sadd.s32 %s18, 1
  %s92 = sld [smem:[#allocation4 + %s91]]
  %s93 = scalar_lea.vmem %s1, %s92
  %s94 = scalar_lea.vmem %s3, 1
  %s95 = scalar_lea.sflag [#allocation2], 1
  // Predicated region
  $region62: #{tpu_custom_call.1} parent=0 // pred_check
    _
  $region63: #{tpu_custom_call.1} parent=0 // pred_check_branch
    %97 = sbr.rel target = $region65
  $region64: #{tpu_custom_call.1} parent=0 // pred_region
    // Predicated region
    $region77: #{tpu_custom_call.1} parent=64 // pred_check
      _
    $region78: #{tpu_custom_call.1} parent=64 // pred_check_branch
      %113 = sbr.rel (0) target = $region80
    $region79: #{tpu_custom_call.1} parent=64 // pred_region
      %s115 = ssub.s32 2, 1
      loop: start=0, step=1, limit=1
      $region81: #{tpu_custom_call.1} parent=79 // loop_pre_header
        _
      $region82: #{tpu_custom_call.1} parent=79 // loop_header
        %s117 = sphi 0, %s121
        %p118 = scmp.ge.s32.totalorder %s117, 1
        %s122 = sphi %s93, %s93
        %s123 = sphi %s94, %s94
      $region83: #{tpu_custom_call.1} parent=79 // loop_header_branch
        %120 = sbr.rel (%p118) target = $region87
      $region84: #{tpu_custom_call.1} parent=79 // loop_body
        %v124 = vld [vmem:[%s122] sm:%s115]
        %125 = vst [vmem:[%s123] sm:%s115] %v124
      $region85: #{tpu_custom_call.1} parent=79 // loop_footer
        %s121 = sadd.s32 1, %s117
      $region86: #{tpu_custom_call.1} parent=79 // loop_footer_branch
        %116 = sbr.rel target = $region82
      $region87: #{tpu_custom_call.1} parent=79 // loop_exit
        _
    $region80: #{tpu_custom_call.1} parent=64 // pred_fallthru
      _
  $region65: #{tpu_custom_call.1} parent=0 // pred_fallthru
    _
  // Predicated region
  $region66: #{tpu_custom_call.1} parent=0 // pred_check
    _
  $region67: #{tpu_custom_call.1} parent=0 // pred_check_branch
    %99 = sbr.rel (0) target = $region69
  $region68: #{tpu_custom_call.1} parent=0 // pred_region
    %s101 = ssub.s32 2, 1
    loop: start=0, step=1, limit=1
    $region70: #{tpu_custom_call.1} parent=68 // loop_pre_header
      _
    $region71: #{tpu_custom_call.1} parent=68 // loop_header
      %s103 = sphi 0, %s107
      %p104 = scmp.ge.s32.totalorder %s103, 1
      %s108 = sphi %s93, %s93
      %s109 = sphi %s94, %s94
    $region72: #{tpu_custom_call.1} parent=68 // loop_header_branch
      %106 = sbr.rel (%p104) target = $region76
    $region73: #{tpu_custom_call.1} parent=68 // loop_body
      %v110 = vld [vmem:[%s108] sm:%s101]
      %111 = vst [vmem:[%s109] sm:%s101] %v110
    $region74: #{tpu_custom_call.1} parent=68 // loop_footer
      %s107 = sadd.s32 1, %s103
    $region75: #{tpu_custom_call.1} parent=68 // loop_footer_branch
      %102 = sbr.rel target = $region71
    $region76: #{tpu_custom_call.1} parent=68 // loop_exit
      _
  $region69: #{tpu_custom_call.1} parent=0 // pred_fallthru
    _
  // Predicated region
  $region88: #{tpu_custom_call.1} parent=0 // pred_check
    _
  $region89: #{tpu_custom_call.1} parent=0 // pred_check_branch
    %128 = sbr.rel (0) target = $region91
  $region90: #{tpu_custom_call.1} parent=0 // pred_region
    %129 = vsyncadd %s95, 16
  $region91: #{tpu_custom_call.1} parent=0 // pred_fallthru
    _
  %s130 = scalar_lea.vmem %s2, %s92
  %s131 = scalar_lea.vmem %s4, 1
  %s132 = scalar_lea.sflag [#allocation2], 9
  // Predicated region
  $region92: #{tpu_custom_call.1} parent=0 // pred_check
    _
  $region93: #{tpu_custom_call.1} parent=0 // pred_check_branch
    %134 = sbr.rel target = $region95
  $region94: #{tpu_custom_call.1} parent=0 // pred_region
    // Predicated region
    $region107: #{tpu_custom_call.1} parent=94 // pred_check
      _
    $region108: #{tpu_custom_call.1} parent=94 // pred_check_branch
      %150 = sbr.rel (0) target = $region110
    $region109: #{tpu_custom_call.1} parent=94 // pred_region
      %s152 = ssub.s32 2, 1
      loop: start=0, step=1, limit=1
      $region111: #{tpu_custom_call.1} parent=109 // loop_pre_header
        _
      $region112: #{tpu_custom_call.1} parent=109 // loop_header
        %s154 = sphi 0, %s158
        %p155 = scmp.ge.s32.totalorder %s154, 1
        %s159 = sphi %s130, %s130
        %s160 = sphi %s131, %s131
      $region113: #{tpu_custom_call.1} parent=109 // loop_header_branch
        %157 = sbr.rel (%p155) target = $region117
      $region114: #{tpu_custom_call.1} parent=109 // loop_body
        %v161 = vld [vmem:[%s159] sm:%s152]
        %162 = vst [vmem:[%s160] sm:%s152] %v161
      $region115: #{tpu_custom_call.1} parent=109 // loop_footer
        %s158 = sadd.s32 1, %s154
      $region116: #{tpu_custom_call.1} parent=109 // loop_footer_branch
        %153 = sbr.rel target = $region112
      $region117: #{tpu_custom_call.1} parent=109 // loop_exit
        _
    $region110: #{tpu_custom_call.1} parent=94 // pred_fallthru
      _
  $region95: #{tpu_custom_call.1} parent=0 // pred_fallthru
    _
  // Predicated region
  $region96: #{tpu_custom_call.1} parent=0 // pred_check
    _
  $region97: #{tpu_custom_call.1} parent=0 // pred_check_branch
    %136 = sbr.rel (0) target = $region99
  $region98: #{tpu_custom_call.1} parent=0 // pred_region
    %s138 = ssub.s32 2, 1
    loop: start=0, step=1, limit=1
    $region100: #{tpu_custom_call.1} parent=98 // loop_pre_header
      _
    $region101: #{tpu_custom_call.1} parent=98 // loop_header
      %s140 = sphi 0, %s144
      %p141 = scmp.ge.s32.totalorder %s140, 1
      %s145 = sphi %s130, %s130
      %s146 = sphi %s131, %s131
    $region102: #{tpu_custom_call.1} parent=98 // loop_header_branch
      %143 = sbr.rel (%p141) target = $region106
    $region103: #{tpu_custom_call.1} parent=98 // loop_body
      %v147 = vld [vmem:[%s145] sm:%s138]
      %148 = vst [vmem:[%s146] sm:%s138] %v147
    $region104: #{tpu_custom_call.1} parent=98 // loop_footer
      %s144 = sadd.s32 1, %s140
    $region105: #{tpu_custom_call.1} parent=98 // loop_footer_branch
      %139 = sbr.rel target = $region101
    $region106: #{tpu_custom_call.1} parent=98 // loop_exit
      _
  $region99: #{tpu_custom_call.1} parent=0 // pred_fallthru
    _
  // Predicated region
  $region118: #{tpu_custom_call.1} parent=0 // pred_check
    _
  $region119: #{tpu_custom_call.1} parent=0 // pred_check_branch
    %165 = sbr.rel (0) target = $region121
  $region120: #{tpu_custom_call.1} parent=0 // pred_region
    %166 = vsyncadd %s132, 16
  $region121: #{tpu_custom_call.1} parent=0 // pred_fallthru
    _
  %s167 = sadd.s32 %s18, 2
  %s168 = sld [smem:[#allocation4 + %s167]]
  %s169 = scalar_lea.vmem %s1, %s168
  %s170 = scalar_lea.vmem %s3, 2
  %s171 = scalar_lea.sflag [#allocation2], 2
  // Predicated region
  $region122: #{tpu_custom_call.1} parent=0 // pred_check
    _
  $region123: #{tpu_custom_call.1} parent=0 // pred_check_branch
    %173 = sbr.rel target = $region125
  $region124: #{tpu_custom_call.1} parent=0 // pred_region
    // Predicated region
    $region137: #{tpu_custom_call.1} parent=124 // pred_check
      _
    $region138: #{tpu_custom_call.1} parent=124 // pred_check_branch
      %189 = sbr.rel (0) target = $region140
    $region139: #{tpu_custom_call.1} parent=124 // pred_region
      %s191 = ssub.s32 2, 1
      loop: start=0, step=1, limit=1
      $region141: #{tpu_custom_call.1} parent=139 // loop_pre_header
        _
      $region142: #{tpu_custom_call.1} parent=139 // loop_header
        %s193 = sphi 0, %s197
        %p194 = scmp.ge.s32.totalorder %s193, 1
        %s198 = sphi %s169, %s169
        %s199 = sphi %s170, %s170
      $region143: #{tpu_custom_call.1} parent=139 // loop_header_branch
        %196 = sbr.rel (%p194) target = $region147
      $region144: #{tpu_custom_call.1} parent=139 // loop_body
        %v200 = vld [vmem:[%s198] sm:%s191]
        %201 = vst [vmem:[%s199] sm:%s191] %v200
      $region145: #{tpu_custom_call.1} parent=139 // loop_footer
        %s197 = sadd.s32 1, %s193
      $region146: #{tpu_custom_call.1} parent=139 // loop_footer_branch
        %192 = sbr.rel target = $region142
      $region147: #{tpu_custom_call.1} parent=139 // loop_exit
        _
    $region140: #{tpu_custom_call.1} parent=124 // pred_fallthru
      _
  $region125: #{tpu_custom_call.1} parent=0 // pred_fallthru
    _
  // Predicated region
  $region126: #{tpu_custom_call.1} parent=0 // pred_check
    _
  $region127: #{tpu_custom_call.1} parent=0 // pred_check_branch
    %175 = sbr.rel (0) target = $region129
  $region128: #{tpu_custom_call.1} parent=0 // pred_region
    %s177 = ssub.s32 2, 1
    loop: start=0, step=1, limit=1
    $region130: #{tpu_custom_call.1} parent=128 // loop_pre_header
      _
    $region131: #{tpu_custom_call.1} parent=128 // loop_header
      %s179 = sphi 0, %s183
      %p180 = scmp.ge.s32.totalorder %s179, 1
      %s184 = sphi %s169, %s169
      %s185 = sphi %s170, %s170
    $region132: #{tpu_custom_call.1} parent=128 // loop_header_branch
      %182 = sbr.rel (%p180) target = $region136
    $region133: #{tpu_custom_call.1} parent=128 // loop_body
      %v186 = vld [vmem:[%s184] sm:%s177]
      %187 = vst [vmem:[%s185] sm:%s177] %v186
    $region134: #{tpu_custom_call.1} parent=128 // loop_footer
      %s183 = sadd.s32 1, %s179
    $region135: #{tpu_custom_call.1} parent=128 // loop_footer_branch
      %178 = sbr.rel target = $region131
    $region136: #{tpu_custom_call.1} parent=128 // loop_exit
      _
  $region129: #{tpu_custom_call.1} parent=0 // pred_fallthru
    _
  // Predicated region
  $region148: #{tpu_custom_call.1} parent=0 // pred_check
    _
  $region149: #{tpu_custom_call.1} parent=0 // pred_check_branch
    %204 = sbr.rel (0) target = $region151
  $region150: #{tpu_custom_call.1} parent=0 // pred_region
    %205 = vsyncadd %s171, 16
  $region151: #{tpu_custom_call.1} parent=0 // pred_fallthru
    _
  %s206 = scalar_lea.vmem %s2, %s168
  %s207 = scalar_lea.vmem %s4, 2
  %s208 = scalar_lea.sflag [#allocation2], 10
  // Predicated region
  $region152: #{tpu_custom_call.1} parent=0 // pred_check
    _
  $region153: #{tpu_custom_call.1} parent=0 // pred_check_branch
    %210 = sbr.rel target = $region155
  $region154: #{tpu_custom_call.1} parent=0 // pred_region
    // Predicated region
    $region167: #{tpu_custom_call.1} parent=154 // pred_check
      _
    $region168: #{tpu_custom_call.1} parent=154 // pred_check_branch
      %226 = sbr.rel (0) target = $region170
    $region169: #{tpu_custom_call.1} parent=154 // pred_region
      %s228 = ssub.s32 2, 1
      loop: start=0, step=1, limit=1
      $region171: #{tpu_custom_call.1} parent=169 // loop_pre_header
        _
      $region172: #{tpu_custom_call.1} parent=169 // loop_header
        %s230 = sphi 0, %s234
        %p231 = scmp.ge.s32.totalorder %s230, 1
        %s235 = sphi %s206, %s206
        %s236 = sphi %s207, %s207
      $region173: #{tpu_custom_call.1} parent=169 // loop_header_branch
        %233 = sbr.rel (%p231) target = $region177
      $region174: #{tpu_custom_call.1} parent=169 // loop_body
        %v237 = vld [vmem:[%s235] sm:%s228]
        %238 = vst [vmem:[%s236] sm:%s228] %v237
      $region175: #{tpu_custom_call.1} parent=169 // loop_footer
        %s234 = sadd.s32 1, %s230
      $region176: #{tpu_custom_call.1} parent=169 // loop_footer_branch
        %229 = sbr.rel target = $region172
      $region177: #{tpu_custom_call.1} parent=169 // loop_exit
        _
    $region170: #{tpu_custom_call.1} parent=154 // pred_fallthru
      _
  $region155: #{tpu_custom_call.1} parent=0 // pred_fallthru
    _
  // Predicated region
  $region156: #{tpu_custom_call.1} parent=0 // pred_check
    _
  $region157: #{tpu_custom_call.1} parent=0 // pred_check_branch
    %212 = sbr.rel (0) target = $region159
  $region158: #{tpu_custom_call.1} parent=0 // pred_region
    %s214 = ssub.s32 2, 1
    loop: start=0, step=1, limit=1
    $region160: #{tpu_custom_call.1} parent=158 // loop_pre_header
      _
    $region161: #{tpu_custom_call.1} parent=158 // loop_header
      %s216 = sphi 0, %s220
      %p217 = scmp.ge.s32.totalorder %s216, 1
      %s221 = sphi %s206, %s206
      %s222 = sphi %s207, %s207
    $region162: #{tpu_custom_call.1} parent=158 // loop_header_branch
      %219 = sbr.rel (%p217) target = $region166
    $region163: #{tpu_custom_call.1} parent=158 // loop_body
      %v223 = vld [vmem:[%s221] sm:%s214]
      %224 = vst [vmem:[%s222] sm:%s214] %v223
    $region164: #{tpu_custom_call.1} parent=158 // loop_footer
      %s220 = sadd.s32 1, %s216
    $region165: #{tpu_custom_call.1} parent=158 // loop_footer_branch
      %215 = sbr.rel target = $region161
    $region166: #{tpu_custom_call.1} parent=158 // loop_exit
      _
  $region159: #{tpu_custom_call.1} parent=0 // pred_fallthru
    _
  // Predicated region
  $region178: #{tpu_custom_call.1} parent=0 // pred_check
    _
  $region179: #{tpu_custom_call.1} parent=0 // pred_check_branch
    %241 = sbr.rel (0) target = $region181
  $region180: #{tpu_custom_call.1} parent=0 // pred_region
    %242 = vsyncadd %s208, 16
  $region181: #{tpu_custom_call.1} parent=0 // pred_fallthru
    _
  %s243 = sadd.s32 %s18, 3
  %s244 = sld [smem:[#allocation4 + %s243]]
  %s245 = scalar_lea.vmem %s1, %s244
  %s246 = scalar_lea.vmem %s3, 3
  %s247 = scalar_lea.sflag [#allocation2], 3
  // Predicated region
  $region182: #{tpu_custom_call.1} parent=0 // pred_check
    _
  $region183: #{tpu_custom_call.1} parent=0 // pred_check_branch
    %249 = sbr.rel target = $region185
  $region184: #{tpu_custom_call.1} parent=0 // pred_region
    // Predicated region
    $region197: #{tpu_custom_call.1} parent=184 // pred_check
      _
    $region198: #{tpu_custom_call.1} parent=184 // pred_check_branch
      %265 = sbr.rel (0) target = $region200
    $region199: #{tpu_custom_call.1} parent=184 // pred_region
      %s267 = ssub.s32 2, 1
      loop: start=0, step=1, limit=1
      $region201: #{tpu_custom_call.1} parent=199 // loop_pre_header
        _
      $region202: #{tpu_custom_call.1} parent=199 // loop_header
        %s269 = sphi 0, %s273
        %p270 = scmp.ge.s32.totalorder %s269, 1
        %s274 = sphi %s245, %s245
        %s275 = sphi %s246, %s246
      $region203: #{tpu_custom_call.1} parent=199 // loop_header_branch
        %272 = sbr.rel (%p270) target = $region207
      $region204: #{tpu_custom_call.1} parent=199 // loop_body
        %v276 = vld [vmem:[%s274] sm:%s267]
        %277 = vst [vmem:[%s275] sm:%s267] %v276
      $region205: #{tpu_custom_call.1} parent=199 // loop_footer
        %s273 = sadd.s32 1, %s269
      $region206: #{tpu_custom_call.1} parent=199 // loop_footer_branch
        %268 = sbr.rel target = $region202
      $region207: #{tpu_custom_call.1} parent=199 // loop_exit
        _
    $region200: #{tpu_custom_call.1} parent=184 // pred_fallthru
      _
  $region185: #{tpu_custom_call.1} parent=0 // pred_fallthru
    _
  // Predicated region
  $region186: #{tpu_custom_call.1} parent=0 // pred_check
    _
  $region187: #{tpu_custom_call.1} parent=0 // pred_check_branch
    %251 = sbr.rel (0) target = $region189
  $region188: #{tpu_custom_call.1} parent=0 // pred_region
    %s253 = ssub.s32 2, 1
    loop: start=0, step=1, limit=1
    $region190: #{tpu_custom_call.1} parent=188 // loop_pre_header
      _
    $region191: #{tpu_custom_call.1} parent=188 // loop_header
      %s255 = sphi 0, %s259
      %p256 = scmp.ge.s32.totalorder %s255, 1
      %s260 = sphi %s245, %s245
      %s261 = sphi %s246, %s246
    $region192: #{tpu_custom_call.1} parent=188 // loop_header_branch
      %258 = sbr.rel (%p256) target = $region196
    $region193: #{tpu_custom_call.1} parent=188 // loop_body
      %v262 = vld [vmem:[%s260] sm:%s253]
      %263 = vst [vmem:[%s261] sm:%s253] %v262
    $region194: #{tpu_custom_call.1} parent=188 // loop_footer
      %s259 = sadd.s32 1, %s255
    $region195: #{tpu_custom_call.1} parent=188 // loop_footer_branch
      %254 = sbr.rel target = $region191
    $region196: #{tpu_custom_call.1} parent=188 // loop_exit
      _
  $region189: #{tpu_custom_call.1} parent=0 // pred_fallthru
    _
  // Predicated region
  $region208: #{tpu_custom_call.1} parent=0 // pred_check
    _
  $region209: #{tpu_custom_call.1} parent=0 // pred_check_branch
    %280 = sbr.rel (0) target = $region211
  $region210: #{tpu_custom_call.1} parent=0 // pred_region
    %281 = vsyncadd %s247, 16
  $region211: #{tpu_custom_call.1} parent=0 // pred_fallthru
    _
  %s282 = scalar_lea.vmem %s2, %s244
  %s283 = scalar_lea.vmem %s4, 3
  %s284 = scalar_lea.sflag [#allocation2], 11
  // Predicated region
  $region212: #{tpu_custom_call.1} parent=0 // pred_check
    _
  $region213: #{tpu_custom_call.1} parent=0 // pred_check_branch
    %286 = sbr.rel target = $region215
  $region214: #{tpu_custom_call.1} parent=0 // pred_region
    // Predicated region
    $region227: #{tpu_custom_call.1} parent=214 // pred_check
      _
    $region228: #{tpu_custom_call.1} parent=214 // pred_check_branch
      %302 = sbr.rel (0) target = $region230
    $region229: #{tpu_custom_call.1} parent=214 // pred_region
      %s304 = ssub.s32 2, 1
      loop: start=0, step=1, limit=1
      $region231: #{tpu_custom_call.1} parent=229 // loop_pre_header
        _
      $region232: #{tpu_custom_call.1} parent=229 // loop_header
        %s306 = sphi 0, %s310
        %p307 = scmp.ge.s32.totalorder %s306, 1
        %s311 = sphi %s282, %s282
        %s312 = sphi %s283, %s283
      $region233: #{tpu_custom_call.1} parent=229 // loop_header_branch
        %309 = sbr.rel (%p307) target = $region237
      $region234: #{tpu_custom_call.1} parent=229 // loop_body
        %v313 = vld [vmem:[%s311] sm:%s304]
        %314 = vst [vmem:[%s312] sm:%s304] %v313
      $region235: #{tpu_custom_call.1} parent=229 // loop_footer
        %s310 = sadd.s32 1, %s306
      $region236: #{tpu_custom_call.1} parent=229 // loop_footer_branch
        %305 = sbr.rel target = $region232
      $region237: #{tpu_custom_call.1} parent=229 // loop_exit
        _
    $region230: #{tpu_custom_call.1} parent=214 // pred_fallthru
      _
  $region215: #{tpu_custom_call.1} parent=0 // pred_fallthru
    _
  // Predicated region
  $region216: #{tpu_custom_call.1} parent=0 // pred_check
    _
  $region217: #{tpu_custom_call.1} parent=0 // pred_check_branch
    %288 = sbr.rel (0) target = $region219
  $region218: #{tpu_custom_call.1} parent=0 // pred_region
    %s290 = ssub.s32 2, 1
    loop: start=0, step=1, limit=1
    $region220: #{tpu_custom_call.1} parent=218 // loop_pre_header
      _
    $region221: #{tpu_custom_call.1} parent=218 // loop_header
      %s292 = sphi 0, %s296
      %p293 = scmp.ge.s32.totalorder %s292, 1
      %s297 = sphi %s282, %s282
      %s298 = sphi %s283, %s283
    $region222: #{tpu_custom_call.1} parent=218 // loop_header_branch
      %295 = sbr.rel (%p293) target = $region226
    $region223: #{tpu_custom_call.1} parent=218 // loop_body
      %v299 = vld [vmem:[%s297] sm:%s290]
      %300 = vst [vmem:[%s298] sm:%s290] %v299
    $region224: #{tpu_custom_call.1} parent=218 // loop_footer
      %s296 = sadd.s32 1, %s292
    $region225: #{tpu_custom_call.1} parent=218 // loop_footer_branch
      %291 = sbr.rel target = $region221
    $region226: #{tpu_custom_call.1} parent=218 // loop_exit
      _
  $region219: #{tpu_custom_call.1} parent=0 // pred_fallthru
    _
  // Predicated region
  $region238: #{tpu_custom_call.1} parent=0 // pred_check
    _
  $region239: #{tpu_custom_call.1} parent=0 // pred_check_branch
    %317 = sbr.rel (0) target = $region241
  $region240: #{tpu_custom_call.1} parent=0 // pred_region
    %318 = vsyncadd %s284, 16
  $region241: #{tpu_custom_call.1} parent=0 // pred_fallthru
    _
  %s319 = sadd.s32 %s18, 4
  %s320 = sld [smem:[#allocation4 + %s319]]
  %s321 = scalar_lea.vmem %s1, %s320
  %s322 = scalar_lea.vmem %s3, 4
  %s323 = scalar_lea.sflag [#allocation2], 4
  // Predicated region
  $region242: #{tpu_custom_call.1} parent=0 // pred_check
    _
  $region243: #{tpu_custom_call.1} parent=0 // pred_check_branch
    %325 = sbr.rel target = $region245
  $region244: #{tpu_custom_call.1} parent=0 // pred_region
    // Predicated region
    $region257: #{tpu_custom_call.1} parent=244 // pred_check
      _
    $region258: #{tpu_custom_call.1} parent=244 // pred_check_branch
      %341 = sbr.rel (0) target = $region260
    $region259: #{tpu_custom_call.1} parent=244 // pred_region
      %s343 = ssub.s32 2, 1
      loop: start=0, step=1, limit=1
      $region261: #{tpu_custom_call.1} parent=259 // loop_pre_header
        _
      $region262: #{tpu_custom_call.1} parent=259 // loop_header
        %s345 = sphi 0, %s349
        %p346 = scmp.ge.s32.totalorder %s345, 1
        %s350 = sphi %s321, %s321
        %s351 = sphi %s322, %s322
      $region263: #{tpu_custom_call.1} parent=259 // loop_header_branch
        %348 = sbr.rel (%p346) target = $region267
      $region264: #{tpu_custom_call.1} parent=259 // loop_body
        %v352 = vld [vmem:[%s350] sm:%s343]
        %353 = vst [vmem:[%s351] sm:%s343] %v352
      $region265: #{tpu_custom_call.1} parent=259 // loop_footer
        %s349 = sadd.s32 1, %s345
      $region266: #{tpu_custom_call.1} parent=259 // loop_footer_branch
        %344 = sbr.rel target = $region262
      $region267: #{tpu_custom_call.1} parent=259 // loop_exit
        _
    $region260: #{tpu_custom_call.1} parent=244 // pred_fallthru
      _
  $region245: #{tpu_custom_call.1} parent=0 // pred_fallthru
    _
  // Predicated region
  $region246: #{tpu_custom_call.1} parent=0 // pred_check
    _
  $region247: #{tpu_custom_call.1} parent=0 // pred_check_branch
    %327 = sbr.rel (0) target = $region249
  $region248: #{tpu_custom_call.1} parent=0 // pred_region
    %s329 = ssub.s32 2, 1
    loop: start=0, step=1, limit=1
    $region250: #{tpu_custom_call.1} parent=248 // loop_pre_header
      _
    $region251: #{tpu_custom_call.1} parent=248 // loop_header
      %s331 = sphi 0, %s335
      %p332 = scmp.ge.s32.totalorder %s331, 1
      %s336 = sphi %s321, %s321
      %s337 = sphi %s322, %s322
    $region252: #{tpu_custom_call.1} parent=248 // loop_header_branch
      %334 = sbr.rel (%p332) target = $region256
    $region253: #{tpu_custom_call.1} parent=248 // loop_body
      %v338 = vld [vmem:[%s336] sm:%s329]
      %339 = vst [vmem:[%s337] sm:%s329] %v338
    $region254: #{tpu_custom_call.1} parent=248 // loop_footer
      %s335 = sadd.s32 1, %s331
    $region255: #{tpu_custom_call.1} parent=248 // loop_footer_branch
      %330 = sbr.rel target = $region251
    $region256: #{tpu_custom_call.1} parent=248 // loop_exit
      _
  $region249: #{tpu_custom_call.1} parent=0 // pred_fallthru
    _
  // Predicated region
  $region268: #{tpu_custom_call.1} parent=0 // pred_check
    _
  $region269: #{tpu_custom_call.1} parent=0 // pred_check_branch
    %356 = sbr.rel (0) target = $region271
  $region270: #{tpu_custom_call.1} parent=0 // pred_region
    %357 = vsyncadd %s323, 16
  $region271: #{tpu_custom_call.1} parent=0 // pred_fallthru
    _
  %s358 = scalar_lea.vmem %s2, %s320
  %s359 = scalar_lea.vmem %s4, 4
  %s360 = scalar_lea.sflag [#allocation2], 12
  // Predicated region
  $region272: #{tpu_custom_call.1} parent=0 // pred_check
    _
  $region273: #{tpu_custom_call.1} parent=0 // pred_check_branch
    %362 = sbr.rel target = $region275
  $region274: #{tpu_custom_call.1} parent=0 // pred_region
    // Predicated region
    $region287: #{tpu_custom_call.1} parent=274 // pred_check
      _
    $region288: #{tpu_custom_call.1} parent=274 // pred_check_branch
      %378 = sbr.rel (0) target = $region290
    $region289: #{tpu_custom_call.1} parent=274 // pred_region
      %s380 = ssub.s32 2, 1
      loop: start=0, step=1, limit=1
      $region291: #{tpu_custom_call.1} parent=289 // loop_pre_header
        _
      $region292: #{tpu_custom_call.1} parent=289 // loop_header
        %s382 = sphi 0, %s386
        %p383 = scmp.ge.s32.totalorder %s382, 1
        %s387 = sphi %s358, %s358
        %s388 = sphi %s359, %s359
      $region293: #{tpu_custom_call.1} parent=289 // loop_header_branch
        %385 = sbr.rel (%p383) target = $region297
      $region294: #{tpu_custom_call.1} parent=289 // loop_body
        %v389 = vld [vmem:[%s387] sm:%s380]
        %390 = vst [vmem:[%s388] sm:%s380] %v389
      $region295: #{tpu_custom_call.1} parent=289 // loop_footer
        %s386 = sadd.s32 1, %s382
      $region296: #{tpu_custom_call.1} parent=289 // loop_footer_branch
        %381 = sbr.rel target = $region292
      $region297: #{tpu_custom_call.1} parent=289 // loop_exit
        _
    $region290: #{tpu_custom_call.1} parent=274 // pred_fallthru
      _
  $region275: #{tpu_custom_call.1} parent=0 // pred_fallthru
    _
  // Predicated region
  $region276: #{tpu_custom_call.1} parent=0 // pred_check
    _
  $region277: #{tpu_custom_call.1} parent=0 // pred_check_branch
    %364 = sbr.rel (0) target = $region279
  $region278: #{tpu_custom_call.1} parent=0 // pred_region
    %s366 = ssub.s32 2, 1
    loop: start=0, step=1, limit=1
    $region280: #{tpu_custom_call.1} parent=278 // loop_pre_header
      _
    $region281: #{tpu_custom_call.1} parent=278 // loop_header
      %s368 = sphi 0, %s372
      %p369 = scmp.ge.s32.totalorder %s368, 1
      %s373 = sphi %s358, %s358
      %s374 = sphi %s359, %s359
    $region282: #{tpu_custom_call.1} parent=278 // loop_header_branch
      %371 = sbr.rel (%p369) target = $region286
    $region283: #{tpu_custom_call.1} parent=278 // loop_body
      %v375 = vld [vmem:[%s373] sm:%s366]
      %376 = vst [vmem:[%s374] sm:%s366] %v375
    $region284: #{tpu_custom_call.1} parent=278 // loop_footer
      %s372 = sadd.s32 1, %s368
    $region285: #{tpu_custom_call.1} parent=278 // loop_footer_branch
      %367 = sbr.rel target = $region281
    $region286: #{tpu_custom_call.1} parent=278 // loop_exit
      _
  $region279: #{tpu_custom_call.1} parent=0 // pred_fallthru
    _
  // Predicated region
  $region298: #{tpu_custom_call.1} parent=0 // pred_check
    _
  $region299: #{tpu_custom_call.1} parent=0 // pred_check_branch
    %393 = sbr.rel (0) target = $region301
  $region300: #{tpu_custom_call.1} parent=0 // pred_region
    %394 = vsyncadd %s360, 16
  $region301: #{tpu_custom_call.1} parent=0 // pred_fallthru
    _
  %s395 = sadd.s32 %s18, 5
  %s396 = sld [smem:[#allocation4 + %s395]]
  %s397 = scalar_lea.vmem %s1, %s396
  %s398 = scalar_lea.vmem %s3, 5
  %s399 = scalar_lea.sflag [#allocation2], 5
  // Predicated region
  $region302: #{tpu_custom_call.1} parent=0 // pred_check
    _
  $region303: #{tpu_custom_call.1} parent=0 // pred_check_branch
    %401 = sbr.rel target = $region305
  $region304: #{tpu_custom_call.1} parent=0 // pred_region
    // Predicated region
    $region317: #{tpu_custom_call.1} parent=304 // pred_check
      _
    $region318: #{tpu_custom_call.1} parent=304 // pred_check_branch
      %417 = sbr.rel (0) target = $region320
    $region319: #{tpu_custom_call.1} parent=304 // pred_region
      %s419 = ssub.s32 2, 1
      loop: start=0, step=1, limit=1
      $region321: #{tpu_custom_call.1} parent=319 // loop_pre_header
        _
      $region322: #{tpu_custom_call.1} parent=319 // loop_header
        %s421 = sphi 0, %s425
        %p422 = scmp.ge.s32.totalorder %s421, 1
        %s426 = sphi %s397, %s397
        %s427 = sphi %s398, %s398
      $region323: #{tpu_custom_call.1} parent=319 // loop_header_branch
        %424 = sbr.rel (%p422) target = $region327
      $region324: #{tpu_custom_call.1} parent=319 // loop_body
        %v428 = vld [vmem:[%s426] sm:%s419]
        %429 = vst [vmem:[%s427] sm:%s419] %v428
      $region325: #{tpu_custom_call.1} parent=319 // loop_footer
        %s425 = sadd.s32 1, %s421
      $region326: #{tpu_custom_call.1} parent=319 // loop_footer_branch
        %420 = sbr.rel target = $region322
      $region327: #{tpu_custom_call.1} parent=319 // loop_exit
        _
    $region320: #{tpu_custom_call.1} parent=304 // pred_fallthru
      _
  $region305: #{tpu_custom_call.1} parent=0 // pred_fallthru
    _
  // Predicated region
  $region306: #{tpu_custom_call.1} parent=0 // pred_check
    _
  $region307: #{tpu_custom_call.1} parent=0 // pred_check_branch
    %403 = sbr.rel (0) target = $region309
  $region308: #{tpu_custom_call.1} parent=0 // pred_region
    %s405 = ssub.s32 2, 1
    loop: start=0, step=1, limit=1
    $region310: #{tpu_custom_call.1} parent=308 // loop_pre_header
      _
    $region311: #{tpu_custom_call.1} parent=308 // loop_header
      %s407 = sphi 0, %s411
      %p408 = scmp.ge.s32.totalorder %s407, 1
      %s412 = sphi %s397, %s397
      %s413 = sphi %s398, %s398
    $region312: #{tpu_custom_call.1} parent=308 // loop_header_branch
      %410 = sbr.rel (%p408) target = $region316
    $region313: #{tpu_custom_call.1} parent=308 // loop_body
      %v414 = vld [vmem:[%s412] sm:%s405]
      %415 = vst [vmem:[%s413] sm:%s405] %v414
    $region314: #{tpu_custom_call.1} parent=308 // loop_footer
      %s411 = sadd.s32 1, %s407
    $region315: #{tpu_custom_call.1} parent=308 // loop_footer_branch
      %406 = sbr.rel target = $region311
    $region316: #{tpu_custom_call.1} parent=308 // loop_exit
      _
  $region309: #{tpu_custom_call.1} parent=0 // pred_fallthru
    _
  // Predicated region
  $region328: #{tpu_custom_call.1} parent=0 // pred_check
    _
  $region329: #{tpu_custom_call.1} parent=0 // pred_check_branch
    %432 = sbr.rel (0) target = $region331
  $region330: #{tpu_custom_call.1} parent=0 // pred_region
    %433 = vsyncadd %s399, 16
  $region331: #{tpu_custom_call.1} parent=0 // pred_fallthru
    _
  %s434 = scalar_lea.vmem %s2, %s396
  %s435 = scalar_lea.vmem %s4, 5
  %s436 = scalar_lea.sflag [#allocation2], 13
  // Predicated region
  $region332: #{tpu_custom_call.1} parent=0 // pred_check
    _
  $region333: #{tpu_custom_call.1} parent=0 // pred_check_branch
    %438 = sbr.rel target = $region335
  $region334: #{tpu_custom_call.1} parent=0 // pred_region
    // Predicated region
    $region347: #{tpu_custom_call.1} parent=334 // pred_check
      _
    $region348: #{tpu_custom_call.1} parent=334 // pred_check_branch
      %454 = sbr.rel (0) target = $region350
    $region349: #{tpu_custom_call.1} parent=334 // pred_region
      %s456 = ssub.s32 2, 1
      loop: start=0, step=1, limit=1
      $region351: #{tpu_custom_call.1} parent=349 // loop_pre_header
        _
      $region352: #{tpu_custom_call.1} parent=349 // loop_header
        %s458 = sphi 0, %s462
        %p459 = scmp.ge.s32.totalorder %s458, 1
        %s463 = sphi %s434, %s434
        %s464 = sphi %s435, %s435
      $region353: #{tpu_custom_call.1} parent=349 // loop_header_branch
        %461 = sbr.rel (%p459) target = $region357
      $region354: #{tpu_custom_call.1} parent=349 // loop_body
        %v465 = vld [vmem:[%s463] sm:%s456]
        %466 = vst [vmem:[%s464] sm:%s456] %v465
      $region355: #{tpu_custom_call.1} parent=349 // loop_footer
        %s462 = sadd.s32 1, %s458
      $region356: #{tpu_custom_call.1} parent=349 // loop_footer_branch
        %457 = sbr.rel target = $region352
      $region357: #{tpu_custom_call.1} parent=349 // loop_exit
        _
    $region350: #{tpu_custom_call.1} parent=334 // pred_fallthru
      _
  $region335: #{tpu_custom_call.1} parent=0 // pred_fallthru
    _
  // Predicated region
  $region336: #{tpu_custom_call.1} parent=0 // pred_check
    _
  $region337: #{tpu_custom_call.1} parent=0 // pred_check_branch
    %440 = sbr.rel (0) target = $region339
  $region338: #{tpu_custom_call.1} parent=0 // pred_region
    %s442 = ssub.s32 2, 1
    loop: start=0, step=1, limit=1
    $region340: #{tpu_custom_call.1} parent=338 // loop_pre_header
      _
    $region341: #{tpu_custom_call.1} parent=338 // loop_header
      %s444 = sphi 0, %s448
      %p445 = scmp.ge.s32.totalorder %s444, 1
      %s449 = sphi %s434, %s434
      %s450 = sphi %s435, %s435
    $region342: #{tpu_custom_call.1} parent=338 // loop_header_branch
      %447 = sbr.rel (%p445) target = $region346
    $region343: #{tpu_custom_call.1} parent=338 // loop_body
      %v451 = vld [vmem:[%s449] sm:%s442]
      %452 = vst [vmem:[%s450] sm:%s442] %v451
    $region344: #{tpu_custom_call.1} parent=338 // loop_footer
      %s448 = sadd.s32 1, %s444
    $region345: #{tpu_custom_call.1} parent=338 // loop_footer_branch
      %443 = sbr.rel target = $region341
    $region346: #{tpu_custom_call.1} parent=338 // loop_exit
      _
  $region339: #{tpu_custom_call.1} parent=0 // pred_fallthru
    _
  // Predicated region
  $region358: #{tpu_custom_call.1} parent=0 // pred_check
    _
  $region359: #{tpu_custom_call.1} parent=0 // pred_check_branch
    %469 = sbr.rel (0) target = $region361
  $region360: #{tpu_custom_call.1} parent=0 // pred_region
    %470 = vsyncadd %s436, 16
  $region361: #{tpu_custom_call.1} parent=0 // pred_fallthru
    _
  %s471 = sadd.s32 %s18, 6
  %s472 = sld [smem:[#allocation4 + %s471]]
  %s473 = scalar_lea.vmem %s1, %s472
  %s474 = scalar_lea.vmem %s3, 6
  %s475 = scalar_lea.sflag [#allocation2], 6
  // Predicated region
  $region362: #{tpu_custom_call.1} parent=0 // pred_check
    _
  $region363: #{tpu_custom_call.1} parent=0 // pred_check_branch
    %477 = sbr.rel target = $region365
  $region364: #{tpu_custom_call.1} parent=0 // pred_region
    // Predicated region
    $region377: #{tpu_custom_call.1} parent=364 // pred_check
      _
    $region378: #{tpu_custom_call.1} parent=364 // pred_check_branch
      %493 = sbr.rel (0) target = $region380
    $region379: #{tpu_custom_call.1} parent=364 // pred_region
      %s495 = ssub.s32 2, 1
      loop: start=0, step=1, limit=1
      $region381: #{tpu_custom_call.1} parent=379 // loop_pre_header
        _
      $region382: #{tpu_custom_call.1} parent=379 // loop_header
        %s497 = sphi 0, %s501
        %p498 = scmp.ge.s32.totalorder %s497, 1
        %s502 = sphi %s473, %s473
        %s503 = sphi %s474, %s474
      $region383: #{tpu_custom_call.1} parent=379 // loop_header_branch
        %500 = sbr.rel (%p498) target = $region387
      $region384: #{tpu_custom_call.1} parent=379 // loop_body
        %v504 = vld [vmem:[%s502] sm:%s495]
        %505 = vst [vmem:[%s503] sm:%s495] %v504
      $region385: #{tpu_custom_call.1} parent=379 // loop_footer
        %s501 = sadd.s32 1, %s497
      $region386: #{tpu_custom_call.1} parent=379 // loop_footer_branch
        %496 = sbr.rel target = $region382
      $region387: #{tpu_custom_call.1} parent=379 // loop_exit
        _
    $region380: #{tpu_custom_call.1} parent=364 // pred_fallthru
      _
  $region365: #{tpu_custom_call.1} parent=0 // pred_fallthru
    _
  // Predicated region
  $region366: #{tpu_custom_call.1} parent=0 // pred_check
    _
  $region367: #{tpu_custom_call.1} parent=0 // pred_check_branch
    %479 = sbr.rel (0) target = $region369
  $region368: #{tpu_custom_call.1} parent=0 // pred_region
    %s481 = ssub.s32 2, 1
    loop: start=0, step=1, limit=1
    $region370: #{tpu_custom_call.1} parent=368 // loop_pre_header
      _
    $region371: #{tpu_custom_call.1} parent=368 // loop_header
      %s483 = sphi 0, %s487
      %p484 = scmp.ge.s32.totalorder %s483, 1
      %s488 = sphi %s473, %s473
      %s489 = sphi %s474, %s474
    $region372: #{tpu_custom_call.1} parent=368 // loop_header_branch
      %486 = sbr.rel (%p484) target = $region376
    $region373: #{tpu_custom_call.1} parent=368 // loop_body
      %v490 = vld [vmem:[%s488] sm:%s481]
      %491 = vst [vmem:[%s489] sm:%s481] %v490
    $region374: #{tpu_custom_call.1} parent=368 // loop_footer
      %s487 = sadd.s32 1, %s483
    $region375: #{tpu_custom_call.1} parent=368 // loop_footer_branch
      %482 = sbr.rel target = $region371
    $region376: #{tpu_custom_call.1} parent=368 // loop_exit
      _
  $region369: #{tpu_custom_call.1} parent=0 // pred_fallthru
    _
  // Predicated region
  $region388: #{tpu_custom_call.1} parent=0 // pred_check
    _
  $region389: #{tpu_custom_call.1} parent=0 // pred_check_branch
    %508 = sbr.rel (0) target = $region391
  $region390: #{tpu_custom_call.1} parent=0 // pred_region
    %509 = vsyncadd %s475, 16
  $region391: #{tpu_custom_call.1} parent=0 // pred_fallthru
    _
  %s510 = scalar_lea.vmem %s2, %s472
  %s511 = scalar_lea.vmem %s4, 6
  %s512 = scalar_lea.sflag [#allocation2], 14
  // Predicated region
  $region392: #{tpu_custom_call.1} parent=0 // pred_check
    _
  $region393: #{tpu_custom_call.1} parent=0 // pred_check_branch
    %514 = sbr.rel target = $region395
  $region394: #{tpu_custom_call.1} parent=0 // pred_region
    // Predicated region
    $region407: #{tpu_custom_call.1} parent=394 // pred_check
      _
    $region408: #{tpu_custom_call.1} parent=394 // pred_check_branch
      %530 = sbr.rel (0) target = $region410
    $region409: #{tpu_custom_call.1} parent=394 // pred_region
      %s532 = ssub.s32 2, 1
      loop: start=0, step=1, limit=1
      $region411: #{tpu_custom_call.1} parent=409 // loop_pre_header
        _
      $region412: #{tpu_custom_call.1} parent=409 // loop_header
        %s534 = sphi 0, %s538
        %p535 = scmp.ge.s32.totalorder %s534, 1
        %s539 = sphi %s510, %s510
        %s540 = sphi %s511, %s511
      $region413: #{tpu_custom_call.1} parent=409 // loop_header_branch
        %537 = sbr.rel (%p535) target = $region417
      $region414: #{tpu_custom_call.1} parent=409 // loop_body
        %v541 = vld [vmem:[%s539] sm:%s532]
        %542 = vst [vmem:[%s540] sm:%s532] %v541
      $region415: #{tpu_custom_call.1} parent=409 // loop_footer
        %s538 = sadd.s32 1, %s534
      $region416: #{tpu_custom_call.1} parent=409 // loop_footer_branch
        %533 = sbr.rel target = $region412
      $region417: #{tpu_custom_call.1} parent=409 // loop_exit
        _
    $region410: #{tpu_custom_call.1} parent=394 // pred_fallthru
      _
  $region395: #{tpu_custom_call.1} parent=0 // pred_fallthru
    _
  // Predicated region
  $region396: #{tpu_custom_call.1} parent=0 // pred_check
    _
  $region397: #{tpu_custom_call.1} parent=0 // pred_check_branch
    %516 = sbr.rel (0) target = $region399
  $region398: #{tpu_custom_call.1} parent=0 // pred_region
    %s518 = ssub.s32 2, 1
    loop: start=0, step=1, limit=1
    $region400: #{tpu_custom_call.1} parent=398 // loop_pre_header
      _
    $region401: #{tpu_custom_call.1} parent=398 // loop_header
      %s520 = sphi 0, %s524
      %p521 = scmp.ge.s32.totalorder %s520, 1
      %s525 = sphi %s510, %s510
      %s526 = sphi %s511, %s511
    $region402: #{tpu_custom_call.1} parent=398 // loop_header_branch
      %523 = sbr.rel (%p521) target = $region406
    $region403: #{tpu_custom_call.1} parent=398 // loop_body
      %v527 = vld [vmem:[%s525] sm:%s518]
      %528 = vst [vmem:[%s526] sm:%s518] %v527
    $region404: #{tpu_custom_call.1} parent=398 // loop_footer
      %s524 = sadd.s32 1, %s520
    $region405: #{tpu_custom_call.1} parent=398 // loop_footer_branch
      %519 = sbr.rel target = $region401
    $region406: #{tpu_custom_call.1} parent=398 // loop_exit
      _
  $region399: #{tpu_custom_call.1} parent=0 // pred_fallthru
    _
  // Predicated region
  $region418: #{tpu_custom_call.1} parent=0 // pred_check
    _
  $region419: #{tpu_custom_call.1} parent=0 // pred_check_branch
    %545 = sbr.rel (0) target = $region421
  $region420: #{tpu_custom_call.1} parent=0 // pred_region
    %546 = vsyncadd %s512, 16
  $region421: #{tpu_custom_call.1} parent=0 // pred_fallthru
    _
  %s547 = sadd.s32 %s18, 7
  %s548 = sld [smem:[#allocation4 + %s547]]
  %s549 = scalar_lea.vmem %s1, %s548
  %s550 = scalar_lea.vmem %s3, 7
  %s551 = scalar_lea.sflag [#allocation2], 7
  // Predicated region
  $region422: #{tpu_custom_call.1} parent=0 // pred_check
    _
  $region423: #{tpu_custom_call.1} parent=0 // pred_check_branch
    %553 = sbr.rel target = $region425
  $region424: #{tpu_custom_call.1} parent=0 // pred_region
    // Predicated region
    $region437: #{tpu_custom_call.1} parent=424 // pred_check
      _
    $region438: #{tpu_custom_call.1} parent=424 // pred_check_branch
      %569 = sbr.rel (0) target = $region440
    $region439: #{tpu_custom_call.1} parent=424 // pred_region
      %s571 = ssub.s32 2, 1
      loop: start=0, step=1, limit=1
      $region441: #{tpu_custom_call.1} parent=439 // loop_pre_header
        _
      $region442: #{tpu_custom_call.1} parent=439 // loop_header
        %s573 = sphi 0, %s577
        %p574 = scmp.ge.s32.totalorder %s573, 1
        %s578 = sphi %s549, %s549
        %s579 = sphi %s550, %s550
      $region443: #{tpu_custom_call.1} parent=439 // loop_header_branch
        %576 = sbr.rel (%p574) target = $region447
      $region444: #{tpu_custom_call.1} parent=439 // loop_body
        %v580 = vld [vmem:[%s578] sm:%s571]
        %581 = vst [vmem:[%s579] sm:%s571] %v580
      $region445: #{tpu_custom_call.1} parent=439 // loop_footer
        %s577 = sadd.s32 1, %s573
      $region446: #{tpu_custom_call.1} parent=439 // loop_footer_branch
        %572 = sbr.rel target = $region442
      $region447: #{tpu_custom_call.1} parent=439 // loop_exit
        _
    $region440: #{tpu_custom_call.1} parent=424 // pred_fallthru
      _
  $region425: #{tpu_custom_call.1} parent=0 // pred_fallthru
    _
  // Predicated region
  $region426: #{tpu_custom_call.1} parent=0 // pred_check
    _
  $region427: #{tpu_custom_call.1} parent=0 // pred_check_branch
    %555 = sbr.rel (0) target = $region429
  $region428: #{tpu_custom_call.1} parent=0 // pred_region
    %s557 = ssub.s32 2, 1
    loop: start=0, step=1, limit=1
    $region430: #{tpu_custom_call.1} parent=428 // loop_pre_header
      _
    $region431: #{tpu_custom_call.1} parent=428 // loop_header
      %s559 = sphi 0, %s563
      %p560 = scmp.ge.s32.totalorder %s559, 1
      %s564 = sphi %s549, %s549
      %s565 = sphi %s550, %s550
    $region432: #{tpu_custom_call.1} parent=428 // loop_header_branch
      %562 = sbr.rel (%p560) target = $region436
    $region433: #{tpu_custom_call.1} parent=428 // loop_body
      %v566 = vld [vmem:[%s564] sm:%s557]
      %567 = vst [vmem:[%s565] sm:%s557] %v566
    $region434: #{tpu_custom_call.1} parent=428 // loop_footer
      %s563 = sadd.s32 1, %s559
    $region435: #{tpu_custom_call.1} parent=428 // loop_footer_branch
      %558 = sbr.rel target = $region431
    $region436: #{tpu_custom_call.1} parent=428 // loop_exit
      _
  $region429: #{tpu_custom_call.1} parent=0 // pred_fallthru
    _
  // Predicated region
  $region448: #{tpu_custom_call.1} parent=0 // pred_check
    _
  $region449: #{tpu_custom_call.1} parent=0 // pred_check_branch
    %584 = sbr.rel (0) target = $region451
  $region450: #{tpu_custom_call.1} parent=0 // pred_region
    %585 = vsyncadd %s551, 16
  $region451: #{tpu_custom_call.1} parent=0 // pred_fallthru
    _
  %s586 = scalar_lea.vmem %s2, %s548
  %s587 = scalar_lea.vmem %s4, 7
  %s588 = scalar_lea.sflag [#allocation2], 15
  // Predicated region
  $region452: #{tpu_custom_call.1} parent=0 // pred_check
    _
  $region453: #{tpu_custom_call.1} parent=0 // pred_check_branch
    %590 = sbr.rel target = $region455
  $region454: #{tpu_custom_call.1} parent=0 // pred_region
    // Predicated region
    $region467: #{tpu_custom_call.1} parent=454 // pred_check
      _
    $region468: #{tpu_custom_call.1} parent=454 // pred_check_branch
      %606 = sbr.rel (0) target = $region470
    $region469: #{tpu_custom_call.1} parent=454 // pred_region
      %s608 = ssub.s32 2, 1
      loop: start=0, step=1, limit=1
      $region471: #{tpu_custom_call.1} parent=469 // loop_pre_header
        _
      $region472: #{tpu_custom_call.1} parent=469 // loop_header
        %s610 = sphi 0, %s614
        %p611 = scmp.ge.s32.totalorder %s610, 1
        %s615 = sphi %s586, %s586
        %s616 = sphi %s587, %s587
      $region473: #{tpu_custom_call.1} parent=469 // loop_header_branch
        %613 = sbr.rel (%p611) target = $region477
      $region474: #{tpu_custom_call.1} parent=469 // loop_body
        %v617 = vld [vmem:[%s615] sm:%s608]
        %618 = vst [vmem:[%s616] sm:%s608] %v617
      $region475: #{tpu_custom_call.1} parent=469 // loop_footer
        %s614 = sadd.s32 1, %s610
      $region476: #{tpu_custom_call.1} parent=469 // loop_footer_branch
        %609 = sbr.rel target = $region472
      $region477: #{tpu_custom_call.1} parent=469 // loop_exit
        _
    $region470: #{tpu_custom_call.1} parent=454 // pred_fallthru
      _
  $region455: #{tpu_custom_call.1} parent=0 // pred_fallthru
    _
  // Predicated region
  $region456: #{tpu_custom_call.1} parent=0 // pred_check
    _
  $region457: #{tpu_custom_call.1} parent=0 // pred_check_branch
    %592 = sbr.rel (0) target = $region459
  $region458: #{tpu_custom_call.1} parent=0 // pred_region
    %s594 = ssub.s32 2, 1
    loop: start=0, step=1, limit=1
    $region460: #{tpu_custom_call.1} parent=458 // loop_pre_header
      _
    $region461: #{tpu_custom_call.1} parent=458 // loop_header
      %s596 = sphi 0, %s600
      %p597 = scmp.ge.s32.totalorder %s596, 1
      %s601 = sphi %s586, %s586
      %s602 = sphi %s587, %s587
    $region462: #{tpu_custom_call.1} parent=458 // loop_header_branch
      %599 = sbr.rel (%p597) target = $region466
    $region463: #{tpu_custom_call.1} parent=458 // loop_body
      %v603 = vld [vmem:[%s601] sm:%s594]
      %604 = vst [vmem:[%s602] sm:%s594] %v603
    $region464: #{tpu_custom_call.1} parent=458 // loop_footer
      %s600 = sadd.s32 1, %s596
    $region465: #{tpu_custom_call.1} parent=458 // loop_footer_branch
      %595 = sbr.rel target = $region461
    $region466: #{tpu_custom_call.1} parent=458 // loop_exit
      _
  $region459: #{tpu_custom_call.1} parent=0 // pred_fallthru
    _
  // Predicated region
  $region478: #{tpu_custom_call.1} parent=0 // pred_check
    _
  $region479: #{tpu_custom_call.1} parent=0 // pred_check_branch
    %621 = sbr.rel (0) target = $region481
  $region480: #{tpu_custom_call.1} parent=0 // pred_region
    %622 = vsyncadd %s588, 16
  $region481: #{tpu_custom_call.1} parent=0 // pred_fallthru
    _
  %s623 = smul.u32 1, 1
  %s624 = sshll.u32 %s623, 4
  %625 = dma.done [#allocation2], %s624
  %s626 = sshll.u32 %s623, 4
  %627 = dma.done %s56, %s626
  %s628 = sshll.u32 %s623, 4
  %629 = dma.done %s95, %s628
  %s630 = sshll.u32 %s623, 4
  %631 = dma.done %s132, %s630
  %s632 = sshll.u32 %s623, 4
  %633 = dma.done %s171, %s632
  %s634 = sshll.u32 %s623, 4
  %635 = dma.done %s208, %s634
  %s636 = sshll.u32 %s623, 4
  %637 = dma.done %s247, %s636
  %s638 = sshll.u32 %s623, 4
  %639 = dma.done %s284, %s638
  %s640 = sshll.u32 %s623, 4
  %641 = dma.done %s323, %s640
  %s642 = sshll.u32 %s623, 4
  %643 = dma.done %s360, %s642
  %s644 = sshll.u32 %s623, 4
  %645 = dma.done %s399, %s644
  %s646 = sshll.u32 %s623, 4
  %647 = dma.done %s436, %s646
  %s648 = sshll.u32 %s623, 4
  %649 = dma.done %s475, %s648
  %s650 = sshll.u32 %s623, 4
  %651 = dma.done %s512, %s650
  %s652 = sshll.u32 %s623, 4
  %653 = dma.done %s551, %s652
  %s654 = sshll.u32 %s623, 4
  %655 = dma.done %s588, %s654
  // Predicated region
  $region482: #{tpu_custom_call.1} parent=0 // pred_check
    _
  $region483: #{tpu_custom_call.1} parent=0 // pred_check_branch
    %657 = sbr.rel (0) target = $region485
  $region484: #{tpu_custom_call.1} parent=0 // pred_region
    _
  $region485: #{tpu_custom_call.1} parent=0 // pred_fallthru
    _
  // Predicated region
  $region486: #{tpu_custom_call.1} parent=0 // pred_check
    _
  $region487: #{tpu_custom_call.1} parent=0 // pred_check_branch
    %659 = sbr.rel (0) target = $region489
  $region488: #{tpu_custom_call.1} parent=0 // pred_region
    _
  $region489: #{tpu_custom_call.1} parent=0 // pred_fallthru
    _
  // Predicated region
  $region490: #{tpu_custom_call.1} parent=0 // pred_check
    _
  $region491: #{tpu_custom_call.1} parent=0 // pred_check_branch
    %661 = sbr.rel (0) target = $region493
  $region492: #{tpu_custom_call.1} parent=0 // pred_region
    _
  $region493: #{tpu_custom_call.1} parent=0 // pred_fallthru
    _
  // Predicated region
  $region494: #{tpu_custom_call.1} parent=0 // pred_check
    _
  $region495: #{tpu_custom_call.1} parent=0 // pred_check_branch
    %663 = sbr.rel (0) target = $region497
  $region496: #{tpu_custom_call.1} parent=0 // pred_region
    _
  $region497: #{tpu_custom_call.1} parent=0 // pred_fallthru
    _
  %664 = vsyncmov [#allocation2]
  %s665 = vpop.sfrf %664
  %p666 = scmp.eq.s32.totalorder %s665, 0
  %p667 = pneg %p666
  %669 = shalt.err (%p667)
  %s670 = scalar_lea.sflag [#allocation2], 1
  %671 = vsyncmov %s670
  %s672 = vpop.sfrf %671
  %p673 = scmp.eq.s32.totalorder %s672, 0
  %p674 = pneg %p673
  %676 = shalt.err (%p674)
  %s677 = scalar_lea.sflag [#allocation2], 2
  %678 = vsyncmov %s677
  %s679 = vpop.sfrf %678
  %p680 = scmp.eq.s32.totalorder %s679, 0
  %p681 = pneg %p680
  %683 = shalt.err (%p681)
  %s684 = scalar_lea.sflag [#allocation2], 3
  %685 = vsyncmov %s684
  %s686 = vpop.sfrf %685
  %p687 = scmp.eq.s32.totalorder %s686, 0
  %p688 = pneg %p687
  %690 = shalt.err (%p688)
  %s691 = scalar_lea.sflag [#allocation2], 4
  %692 = vsyncmov %s691
  %s693 = vpop.sfrf %692
  %p694 = scmp.eq.s32.totalorder %s693, 0
  %p695 = pneg %p694
  %697 = shalt.err (%p695)
  %s698 = scalar_lea.sflag [#allocation2], 5
  %699 = vsyncmov %s698
  %s700 = vpop.sfrf %699
  %p701 = scmp.eq.s32.totalorder %s700, 0
  %p702 = pneg %p701
  %704 = shalt.err (%p702)
  %s705 = scalar_lea.sflag [#allocation2], 6
  %706 = vsyncmov %s705
  %s707 = vpop.sfrf %706
  %p708 = scmp.eq.s32.totalorder %s707, 0
  %p709 = pneg %p708
  %711 = shalt.err (%p709)
  %s712 = scalar_lea.sflag [#allocation2], 7
  %713 = vsyncmov %s712
  %s714 = vpop.sfrf %713
  %p715 = scmp.eq.s32.totalorder %s714, 0
  %p716 = pneg %p715
  %718 = shalt.err (%p716)
  %s719 = scalar_lea.sflag [#allocation2], 8
  %720 = vsyncmov %s719
  %s721 = vpop.sfrf %720
  %p722 = scmp.eq.s32.totalorder %s721, 0
  %p723 = pneg %p722
  %725 = shalt.err (%p723)
  %s726 = scalar_lea.sflag [#allocation2], 9
  %727 = vsyncmov %s726
  %s728 = vpop.sfrf %727
  %p729 = scmp.eq.s32.totalorder %s728, 0
  %p730 = pneg %p729
  %732 = shalt.err (%p730)
  %s733 = scalar_lea.sflag [#allocation2], 10
  %734 = vsyncmov %s733
  %s735 = vpop.sfrf %734
  %p736 = scmp.eq.s32.totalorder %s735, 0
  %p737 = pneg %p736
  %739 = shalt.err (%p737)
  %s740 = scalar_lea.sflag [#allocation2], 11
  %741 = vsyncmov %s740
  %s742 = vpop.sfrf %741
  %p743 = scmp.eq.s32.totalorder %s742, 0
  %p744 = pneg %p743
  %746 = shalt.err (%p744)
  %s747 = scalar_lea.sflag [#allocation2], 12
  %748 = vsyncmov %s747
  %s749 = vpop.sfrf %748
  %p750 = scmp.eq.s32.totalorder %s749, 0
  %p751 = pneg %p750
  %753 = shalt.err (%p751)
  %s754 = scalar_lea.sflag [#allocation2], 13
  %755 = vsyncmov %s754
  %s756 = vpop.sfrf %755
  %p757 = scmp.eq.s32.totalorder %s756, 0
  %p758 = pneg %p757
  %760 = shalt.err (%p758)
  %s761 = scalar_lea.sflag [#allocation2], 14
  %762 = vsyncmov %s761
  %s763 = vpop.sfrf %762
  %p764 = scmp.eq.s32.totalorder %s763, 0
  %p765 = pneg %p764
  %767 = shalt.err (%p765)
  %s768 = scalar_lea.sflag [#allocation2], 15
  %769 = vsyncmov %s768
  %s770 = vpop.sfrf %769
  %p771 = scmp.eq.s32.totalorder %s770, 0
  %p772 = pneg %p771
  %774 = shalt.err (%p772)

</llo_original>
